<compile_context>
chip_gen: v5e
topology: v5e:2x2
jax: 0.10.0
libtpu: 0.0.40
codegen_flags: <defaults>
</compile_context>

<pallas_src>
import functools

import numpy as np
import jax
import jax.numpy as jnp
from jax import lax
from jax.experimental import pallas as pl
from jax.experimental.pallas import tpu as pltpu

LN_EPS = 1e-5
_LANE = 128  # packed-parameter buffer lane width


# ----------------------------------------------------------------------------
# Packed parameter layouts.  Two buffers per channel:
#   * bf16 "weights" buffer (matmul operands), 16-row-aligned slots
#   * f32  "smalls"  buffer (LN params, biases, cls, pos), 8-row-aligned slots
# so the whole weight set is 2 BlockSpec inputs with one DMA window each.
# ----------------------------------------------------------------------------
def _round_up(x, m):
    return (x + m - 1) // m * m


def _weight_specs(pd, d, mlp):
    return (
        ("w_emb", pd, d),
        ("w_q", d, d), ("w_kT", d, d), ("w_v", d, d),
        ("w_o", d, d),
        ("w_1", d, mlp), ("w_2", mlp, d),
    )


def _small_specs(pd, d, mlp, n):
    return (
        ("ln1_g", 1, pd), ("ln1_b", 1, pd),
        ("b_emb", 1, d),
        ("ln2_g", 1, d), ("ln2_b", 1, d),
        ("cls", 1, d), ("pos_cls", 1, d), ("pos_patch", n, d),
        ("lna_g", 1, d), ("lna_b", 1, d),
        ("b_q", 1, d), ("b_v", 1, d), ("b_o", 1, d),
        ("lnm_g", 1, d), ("lnm_b", 1, d),
        ("b_1", 1, mlp), ("b_2", 1, d),
        ("lnf_g", 1, d), ("lnf_b", 1, d),
    )


def _build_layout(specs, align):
    layout, off = {}, 0
    for name, rows, cols in specs:
        assert cols <= _LANE, f"param {name} wider than one lane row"
        layout[name] = (off, rows, cols)
        off += _round_up(rows, align)   # keep every slot sublane aligned
    return layout, _round_up(off, align)


def _derived(prm, d):
    """Host-side (numpy) split of the raw param dict into packed-slot entries."""
    def a(name):
        arr = np.asarray(prm[name], np.float32)
        return arr if arr.ndim == 2 else arr[None, :]

    out = {k: a(k) for k in
           ("ln1_g", "ln1_b", "w_emb", "b_emb", "ln2_g", "ln2_b", "cls",
            "lna_g", "lna_b", "w_o", "b_o", "lnm_g", "lnm_b",
            "w_1", "b_1", "w_2", "b_2", "lnf_g", "lnf_b")}
    pos = a("pos")
    out["pos_cls"] = pos[0:1]
    out["pos_patch"] = np.ascontiguousarray(pos[1:])
    w_qkv = a("w_qkv")
    b_qkv = a("b_qkv")
    out["w_q"] = np.ascontiguousarray(w_qkv[:, 0:d])
    out["w_kT"] = np.ascontiguousarray(w_qkv[:, d:2 * d].T)   # pre-transposed
    out["w_v"] = np.ascontiguousarray(w_qkv[:, 2 * d:3 * d])
    out["b_q"] = np.ascontiguousarray(b_qkv[:, 0:d])
    out["b_v"] = np.ascontiguousarray(b_qkv[:, 2 * d:3 * d])
    # b_k is dropped on purpose: q·b_k is constant over keys and cancels in softmax.
    return out


def _pack_one(vals, specs, align):
    layout, rows = _build_layout(specs, align)
    buf = np.zeros((rows, _LANE), np.float32)
    for name, (off, r, c) in layout.items():
        arr = vals[name]
        assert arr.shape == (r, c), (name, arr.shape, (r, c))
        buf[off:off + r, :c] = arr
    return buf


def pack_encoder_params(params_sst, params_u):
    """Pack once at parameter-load time (outside jit): (2,rw,128) bf16 + (2,rs,128) f32."""
    pd = params_sst["w_emb"].shape[0]
    d = params_sst["w_emb"].shape[1]
    mlp = params_sst["w_1"].shape[1]
    n = params_sst["pos"].shape[0] - 1
    wspecs = _weight_specs(pd, d, mlp)
    sspecs = _small_specs(pd, d, mlp, n)
    dv = [_derived(p, d) for p in (params_sst, params_u)]
    pw = np.stack([_pack_one(v, wspecs, 16) for v in dv])
    ps = np.stack([_pack_one(v, sspecs, 8) for v in dv])
    return jnp.asarray(pw, jnp.bfloat16), jnp.asarray(ps, jnp.float32)


def _layernorm(x, g, b):
    mu = jnp.mean(x, axis=-1, keepdims=True)
    var = jnp.mean(jnp.square(x - mu), axis=-1, keepdims=True)
    return (x - mu) * lax.rsqrt(var + LN_EPS) * g + b


# ----------------------------------------------------------------------------
# Kernel: one (channel, frame-block) grid step encodes TB frames at once.
# ----------------------------------------------------------------------------
def _make_kernel(lw, ls, tb, n, d):
    bf16 = jnp.bfloat16
    f32 = jnp.float32
    scale = d ** -0.5
    nt = tb * n
    # TODO(synk): vit-pytorch Attention scales by dim_head (default 64) and uses
    # a bias-free to_qkv; the synthesized encoder keeps head_dim == dim + bias.

    def kernel(patches_ref, w_ref, s_ref, out_ref):
        # patches_ref block: (1, tb*n, pd) bf16 — real patch rows only (no cls/pad)
        # w_ref block:       (1, rows_w, 128) bf16 — matmul weights
        # s_ref block:       (1, rows_s, 128) f32  — LN params / biases / cls / pos
        def wp(name):                                    # bf16 weight slot
            off, r, c = lw[name]
            return w_ref[0, off:off + r, 0:c]

        def sp(name):                                    # f32 small slot
            off, r, c = ls[name]
            return s_ref[0, off:off + r, 0:c]

        lna_g, lna_b = sp("lna_g"), sp("lna_b")

        # ---- per-step constants from the (frame-independent) cls token ----
        cls_row = sp("cls") + sp("pos_cls")                                   # (1, d)
        y_cls = _layernorm(cls_row, lna_g, lna_b)                             # (1, d)
        q = jnp.dot(y_cls, wp("w_q").astype(f32),
                    preferred_element_type=f32) + sp("b_q")                   # (1, d)
        # Fold the frame-constant cls query into the K projection:
        #   s_j = scale * q·k_j = scale * y_j·(W_k qᵀ) + scale * q·b_k, and the
        #   q·b_k term cancels under softmax shift-invariance, so K is never built.
        w_kq = jnp.dot(q, wp("w_kT").astype(f32),
                       preferred_element_type=f32)                            # (1, d)
        s_cls = jnp.sum(y_cls * w_kq, axis=-1, keepdims=True) * scale         # (1, 1)
        v_cls = jnp.dot(y_cls, wp("w_v").astype(f32),
                        preferred_element_type=f32) + sp("b_v")               # (1, d)

        # ---- to_patch_embedding: LN -> Linear -> LN over all tb*n patch rows ----
        x = patches_ref[0].astype(f32)                                        # (nt, pd)
        x = _layernorm(x, sp("ln1_g"), sp("ln1_b"))
        emb = jnp.dot(x.astype(bf16), wp("w_emb"),
                      preferred_element_type=f32) + sp("b_emb")
        emb = _layernorm(emb, sp("ln2_g"), sp("ln2_b"))                       # (nt, d)

        # ---- + positional embedding (per patch position), pre-norm LN_a ----
        y3 = _layernorm(emb.reshape(tb, n, d) + sp("pos_patch")[None],
                        lna_g, lna_b)                                         # (tb, n, d)
        y_flat = y3.reshape(nt, d)

        # ---- attention: folded-query scores + V only (K never materialized) ----
        scores = jnp.sum(y3 * w_kq[None], axis=-1) * scale                    # (tb, n)
        v_flat = jnp.dot(y_flat.astype(bf16), wp("w_v"),
                         preferred_element_type=f32) + sp("b_v")              # (nt, d)

        m = jnp.maximum(jnp.max(scores, axis=-1, keepdims=True), s_cls)       # (tb, 1)
        e = jnp.exp(scores - m)                                               # (tb, n)
        e_cls = jnp.exp(s_cls - m)                                            # (tb, 1)
        inv = pl.reciprocal(e_cls + jnp.sum(e, axis=-1, keepdims=True),
                            approx=True)                                      # (tb, 1)
        ctx = (jnp.sum(e[:, :, None] * v_flat.reshape(tb, n, d), axis=1)
               + e_cls * v_cls) * inv                                         # (tb, d)

        attn = jnp.dot(ctx.astype(bf16), wp("w_o"),
                       preferred_element_type=f32) + sp("b_o")
        tok = cls_row + attn                                                  # (tb, d)

        # ---- pre-norm MLP on the cls row (exact pruning: depth-1, 'cls' pool) ----
        y = _layernorm(tok, sp("lnm_g"), sp("lnm_b"))
        h = jnp.dot(y.astype(bf16), wp("w_1"),
                    preferred_element_type=f32) + sp("b_1")
        h = jax.nn.gelu(h)   # TODO(synk): torch.nn.GELU default is exact erf
        h = jnp.dot(h.astype(bf16), wp("w_2"),
                    preferred_element_type=f32) + sp("b_2")
        tok = tok + h

        # ---- final LayerNorm + 'cls' pooling ----
        # (lane-dense packing of 4 frames/row skipped: minor-dim reshape risk)
        out_ref[0] = _layernorm(tok, sp("lnf_g"), sp("lnf_b"))

    return kernel


# ----------------------------------------------------------------------------
# Host-side plumbing
# ----------------------------------------------------------------------------
def _make_patch_tokens(x_2d, p1, p2, bt_pad):
    """einops 'b c (h p1) (w p2) -> b (h w) (p1 p2 c)' (c=1 per encoder), bf16,
    channel-major, flattened (frame, patch) axis, NO cls/pad rows, no zero scatter."""
    b, t, c, h, w = x_2d.shape
    bt = b * t
    hn, wn = h // p1, w // p2
    n = hn * wn
    pd = p1 * p2
    x = x_2d.astype(jnp.bfloat16).reshape(bt, c, hn, p1, wn, p2)
    x = x.transpose(1, 0, 2, 4, 3, 5).reshape(c, bt * n, pd)
    if bt_pad > bt:
        x = jnp.pad(x, ((0, 0), (0, (bt_pad - bt) * n), (0, 0)))
    return x


@functools.partial(jax.jit,
                   static_argnames=("patch_size", "dim", "mlp_dim", "frames_per_block"))
def encoder_vit_forward(x_2d, packed_w, packed_s, *, patch_size=(8, 8),
                        dim=32, mlp_dim=64, frames_per_block=256):
    """Mirrors Encoder_ViT.forward: returns (x_enc_s, x_enc_u), each (B, T, D)."""
    b, t, c, h, w = x_2d.shape
    assert c == 2, "expects channel 0 = olr/sst, channel 1 = u"
    p1, p2 = patch_size
    n = (h // p1) * (w // p2)
    pd = p1 * p2
    bt = b * t

    lw, rows_w = _build_layout(_weight_specs(pd, dim, mlp_dim), 16)
    ls, rows_s = _build_layout(_small_specs(pd, dim, mlp_dim, n), 8)
    assert packed_w.shape == (2, rows_w, _LANE) and packed_w.dtype == jnp.bfloat16
    assert packed_s.shape == (2, rows_s, _LANE) and packed_s.dtype == jnp.float32

    if bt > frames_per_block:
        tb = frames_per_block
        assert tb % 16 == 0, "frames_per_block must be a multiple of 16"
    else:
        tb = _round_up(bt, 8)
    bt_pad = _round_up(bt, tb)
    n_blk = bt_pad // tb

    tokens = _make_patch_tokens(x_2d, p1, p2, bt_pad)          # (2, bt_pad*n, pd) bf16

    out = pl.pallas_call(
        _make_kernel(lw, ls, tb, n, dim),
        out_shape=jax.ShapeDtypeStruct((2, bt_pad, dim), jnp.float32),
        grid=(2, n_blk),                   # (channel, frame block) — both independent;
        in_specs=[                         # channel leading so v7x cores split by channel
            pl.BlockSpec((1, tb * n, pd), lambda ci, bi: (ci, bi, 0)),
            pl.BlockSpec((1, rows_w, _LANE), lambda ci, bi: (ci, 0, 0)),
            pl.BlockSpec((1, rows_s, _LANE), lambda ci, bi: (ci, 0, 0)),
        ],
        out_specs=pl.BlockSpec((1, tb, dim), lambda ci, bi: (ci, bi, 0)),
        compiler_params=pltpu.CompilerParams(
            dimension_semantics=("parallel", "parallel")),
    )(tokens, packed_w, packed_s)

    enc = out[:, :bt, :].reshape(2, b, t, dim)
    return enc[0], enc[1]


def init_vit_params(key, patch_dim, dim, mlp_dim, num_patches):
    ks = jax.random.split(key, 8)
    f32 = jnp.float32

    def lin(k, fan_in, shape):
        return jax.random.normal(k, shape, f32) / jnp.sqrt(float(fan_in))

    return {
        "ln1_g": jnp.ones((1, patch_dim), f32),
        "ln1_b": jnp.zeros((1, patch_dim), f32),
        "w_emb": lin(ks[0], patch_dim, (patch_dim, dim)),
        "b_emb": jnp.zeros((1, dim), f32),
        "ln2_g": jnp.ones((1, dim), f32),
        "ln2_b": jnp.zeros((1, dim), f32),
        "cls": jax.random.normal(ks[1], (1, dim), f32),
        "pos": jax.random.normal(ks[2], (num_patches + 1, dim), f32),
        "lna_g": jnp.ones((1, dim), f32),
        "lna_b": jnp.zeros((1, dim), f32),
        "w_qkv": lin(ks[3], dim, (dim, 3 * dim)),
        "b_qkv": jnp.zeros((1, 3 * dim), f32),
        "w_o": lin(ks[4], dim, (dim, dim)),
        "b_o": jnp.zeros((1, dim), f32),
        "lnm_g": jnp.ones((1, dim), f32),
        "lnm_b": jnp.zeros((1, dim), f32),
        "w_1": lin(ks[5], dim, (dim, mlp_dim)),
        "b_1": jnp.zeros((1, mlp_dim), f32),
        "w_2": lin(ks[6], mlp_dim, (mlp_dim, dim)),
        "b_2": jnp.zeros((1, dim), f32),
        "lnf_g": jnp.ones((1, dim), f32),
        "lnf_b": jnp.zeros((1, dim), f32),
    }


# Pure-JAX (f32, full-attention, unpruned, unfolded) reference for self-checking.
def _reference_encode_channel(x_2d, channel, prm, p1, p2):
    b, t, _, h, w = x_2d.shape
    bt = b * t
    x = x_2d[:, :, channel].reshape(bt, h // p1, p1, w // p2, p2)
    x = x.transpose(0, 1, 3, 2, 4).reshape(bt, (h // p1) * (w // p2), p1 * p2)

    def ln(v, g, bb):
        mu = v.mean(-1, keepdims=True)
        var = ((v - mu) ** 2).mean(-1, keepdims=True)
        return (v - mu) / jnp.sqrt(var + LN_EPS) * g + bb

    d = prm["w_emb"].shape[1]
    x = ln(x, prm["ln1_g"], prm["ln1_b"])
    x = x @ prm["w_emb"] + prm["b_emb"]
    x = ln(x, prm["ln2_g"], prm["ln2_b"])
    cls = jnp.broadcast_to(prm["cls"][None], (bt, 1, d))
    tok = jnp.concatenate([cls, x], axis=1) + prm["pos"][None]
    y = ln(tok, prm["lna_g"], prm["lna_b"])
    qkv = y @ prm["w_qkv"] + prm["b_qkv"]
    q, k, v = qkv[..., :d], qkv[..., d:2 * d], qkv[..., 2 * d:]
    s = jnp.einsum("bqd,bkd->bqk", q, k) * (d ** -0.5)
    a = jnp.einsum("bqk,bkd->bqd", jax.nn.softmax(s, axis=-1), v)
    tok = tok + (a @ prm["w_o"] + prm["b_o"])
    y = ln(tok, prm["lnm_g"], prm["lnm_b"])
    tok = tok + (jax.nn.gelu(y @ prm["w_1"] + prm["b_1"]) @ prm["w_2"] + prm["b_2"])
    tok = ln(tok, prm["lnf_g"], prm["lnf_b"])
    return tok[:, 0, :].reshape(b, t, d)


if __name__ == "__main__":
    B, T, C, H, W = 2, 4, 2, 16, 16
    P1 = P2 = 8
    N_PATCH = (H // P1) * (W // P2)          # 4
    PATCH_DIM = P1 * P2 * 1                  # 64 (one channel per encoder)
    DIM, MLP_DIM = 32, 64

    root = jax.random.PRNGKey(0)
    kx, k_sst, k_u = jax.random.split(root, 3)
    x_2d = jax.random.normal(kx, (B, T, C, H, W), jnp.float32)
    params_sst = init_vit_params(k_sst, PATCH_DIM, DIM, MLP_DIM, N_PATCH)
    params_u = init_vit_params(k_u, PATCH_DIM, DIM, MLP_DIM, N_PATCH)

    # Pack params ONCE at load time (outside the jitted forward).
    packed_w, packed_s = pack_encoder_params(params_sst, params_u)

    enc_s, enc_u = encoder_vit_forward(x_2d, packed_w, packed_s,
                                       patch_size=(P1, P2), dim=DIM,
                                       mlp_dim=MLP_DIM)
    jax.block_until_ready((enc_s, enc_u))

    assert enc_s.shape == (B, T, DIM), enc_s.shape
    assert enc_u.shape == (B, T, DIM), enc_u.shape
    assert bool(jnp.all(jnp.isfinite(enc_s))) and bool(jnp.all(jnp.isfinite(enc_u)))

    # Numerical self-check against the f32 pure-JAX reference (kernel uses bf16
    # tokens + bf16 pre-quantized weights + approx reciprocal, hence the loose
    # tolerance).
    ref_s = _reference_encode_channel(x_2d, 0, params_sst, P1, P2)
    ref_u = _reference_encode_channel(x_2d, 1, params_u, P1, P2)
    err = max(float(jnp.max(jnp.abs(enc_s - ref_s))),
              float(jnp.max(jnp.abs(enc_u - ref_u))))
    assert err < 0.2, f"kernel deviates from reference: max|diff|={err}"

    print("KERNEL_OK")
</pallas_src>

<mosaic_0001>
module attributes {stable_mosaic.version = 11 : i64} {
  func.func @kernel(%arg0: i32, %arg1: i32, %arg2: memref<1x32x64xbf16, #tpu.memory_space<vmem>>, %arg3: memref<1x288x128xbf16, #tpu.memory_space<vmem>>, %arg4: memref<1x152x128xf32, #tpu.memory_space<vmem>>, %arg5: memref<1x8x32xf32, #tpu.memory_space<vmem>>) attributes {dimension_semantics = [#tpu.dimension_semantics<parallel>, #tpu.dimension_semantics<parallel>], iteration_bounds = array<i64: 2, 1>, scalar_prefetch = 0 : i64, scratch_operands = 0 : i64, tpu.core_type = #tpu.core_type<tc>, window_params = [{transform_indices = @transform_0, window_bounds = array<i64: 1, 32, 64>}, {transform_indices = @transform_1, window_bounds = array<i64: 1, 288, 128>}, {transform_indices = @transform_2, window_bounds = array<i64: 1, 152, 128>}, {transform_indices = @transform_3, window_bounds = array<i64: 1, 8, 32>}]} {
    %c0 = arith.constant 0 : index
    %c64 = arith.constant 64 : index
    %c0_0 = arith.constant 0 : index
    %0 = vector.load %arg4[%c0, %c64, %c0_0] : memref<1x152x128xf32, #tpu.memory_space<vmem>>, vector<1x1x32xf32>
    %1 = vector.shape_cast %0 : vector<1x1x32xf32> to vector<1x32xf32>
    %c0_1 = arith.constant 0 : index
    %c72 = arith.constant 72 : index
    %c0_2 = arith.constant 0 : index
    %2 = vector.load %arg4[%c0_1, %c72, %c0_2] : memref<1x152x128xf32, #tpu.memory_space<vmem>>, vector<1x1x32xf32>
    %3 = vector.shape_cast %2 : vector<1x1x32xf32> to vector<1x32xf32>
    %c0_3 = arith.constant 0 : index
    %c40 = arith.constant 40 : index
    %c0_4 = arith.constant 0 : index
    %4 = vector.load %arg4[%c0_3, %c40, %c0_4] : memref<1x152x128xf32, #tpu.memory_space<vmem>>, vector<1x1x32xf32>
    %5 = vector.shape_cast %4 : vector<1x1x32xf32> to vector<1x32xf32>
    %c0_5 = arith.constant 0 : index
    %c48 = arith.constant 48 : index
    %c0_6 = arith.constant 0 : index
    %6 = vector.load %arg4[%c0_5, %c48, %c0_6] : memref<1x152x128xf32, #tpu.memory_space<vmem>>, vector<1x1x32xf32>
    %7 = vector.shape_cast %6 : vector<1x1x32xf32> to vector<1x32xf32>
    %8 = arith.addf %5, %7 : vector<1x32xf32>
    %cst = arith.constant dense<0.000000e+00> : vector<1xf32>
    %9 = vector.multi_reduction <add>, %8, %cst [1] : vector<1x32xf32> to vector<1xf32>
    %10 = vector.shape_cast %9 : vector<1xf32> to vector<1x1xf32>
    %cst_7 = arith.constant 3.200000e+01 : f32
    %11 = vector.broadcast %cst_7 : f32 to vector<1x1xf32>
    %12 = arith.divf %10, %11 : vector<1x1xf32>
    %13 = vector.broadcast %12 : vector<1x1xf32> to vector<1x32xf32>
    %14 = arith.subf %8, %13 : vector<1x32xf32>
    %15 = arith.mulf %14, %14 : vector<1x32xf32>
    %cst_8 = arith.constant dense<0.000000e+00> : vector<1xf32>
    %16 = vector.multi_reduction <add>, %15, %cst_8 [1] : vector<1x32xf32> to vector<1xf32>
    %17 = vector.shape_cast %16 : vector<1xf32> to vector<1x1xf32>
    %cst_9 = arith.constant 3.200000e+01 : f32
    %18 = vector.broadcast %cst_9 : f32 to vector<1x1xf32>
    %19 = arith.divf %17, %18 : vector<1x1xf32>
    %20 = vector.broadcast %12 : vector<1x1xf32> to vector<1x32xf32>
    %21 = arith.subf %8, %20 : vector<1x32xf32>
    %cst_10 = arith.constant 9.99999974E-6 : f32
    %22 = vector.broadcast %cst_10 : f32 to vector<1x1xf32>
    %23 = arith.addf %19, %22 : vector<1x1xf32>
    %24 = math.rsqrt %23 : vector<1x1xf32>
    %25 = vector.broadcast %24 : vector<1x1xf32> to vector<1x32xf32>
    %26 = arith.mulf %21, %25 : vector<1x32xf32>
    %27 = arith.mulf %26, %1 : vector<1x32xf32>
    %28 = arith.addf %27, %3 : vector<1x32xf32>
    %c0_11 = arith.constant 0 : index
    %c64_12 = arith.constant 64 : index
    %c0_13 = arith.constant 0 : index
    %29 = vector.load %arg3[%c0_11, %c64_12, %c0_13] : memref<1x288x128xbf16, #tpu.memory_space<vmem>>, vector<1x32x32xbf16>
    %30 = vector.shape_cast %29 : vector<1x32x32xbf16> to vector<32x32xbf16>
    %31 = arith.extf %30 : vector<32x32xbf16> to vector<32x32xf32>
    %cst_14 = arith.constant dense<0.000000e+00> : vector<1x32xf32>
    %32 = tpu.matmul %28, %31, %cst_14 {dimension_numbers = #tpu.dot_dimension_numbers<[1], [0], [0], [1], [0, 0, 1, 1], [], []>} : vector<1x32xf32>, vector<32x32xf32>, vector<1x32xf32> -> vector<1x32xf32>
    %c0_15 = arith.constant 0 : index
    %c80 = arith.constant 80 : index
    %c0_16 = arith.constant 0 : index
    %33 = vector.load %arg4[%c0_15, %c80, %c0_16] : memref<1x152x128xf32, #tpu.memory_space<vmem>>, vector<1x1x32xf32>
    %34 = vector.shape_cast %33 : vector<1x1x32xf32> to vector<1x32xf32>
    %35 = arith.addf %32, %34 : vector<1x32xf32>
    %c0_17 = arith.constant 0 : index
    %c96 = arith.constant 96 : index
    %c0_18 = arith.constant 0 : index
    %36 = vector.load %arg3[%c0_17, %c96, %c0_18] : memref<1x288x128xbf16, #tpu.memory_space<vmem>>, vector<1x32x32xbf16>
    %37 = vector.shape_cast %36 : vector<1x32x32xbf16> to vector<32x32xbf16>
    %38 = arith.extf %37 : vector<32x32xbf16> to vector<32x32xf32>
    %cst_19 = arith.constant dense<0.000000e+00> : vector<1x32xf32>
    %39 = tpu.matmul %35, %38, %cst_19 {dimension_numbers = #tpu.dot_dimension_numbers<[1], [0], [0], [1], [0, 0, 1, 1], [], []>} : vector<1x32xf32>, vector<32x32xf32>, vector<1x32xf32> -> vector<1x32xf32>
    %40 = arith.mulf %28, %39 : vector<1x32xf32>
    %cst_20 = arith.constant dense<0.000000e+00> : vector<1xf32>
    %41 = vector.multi_reduction <add>, %40, %cst_20 [1] : vector<1x32xf32> to vector<1xf32>
    %42 = vector.shape_cast %41 : vector<1xf32> to vector<1x1xf32>
    %cst_21 = arith.constant 0.176776692 : f32
    %43 = vector.broadcast %cst_21 : f32 to vector<1x1xf32>
    %44 = arith.mulf %42, %43 : vector<1x1xf32>
    %c0_22 = arith.constant 0 : index
    %c128 = arith.constant 128 : index
    %c0_23 = arith.constant 0 : index
    %45 = vector.load %arg3[%c0_22, %c128, %c0_23] : memref<1x288x128xbf16, #tpu.memory_space<vmem>>, vector<1x32x32xbf16>
    %46 = vector.shape_cast %45 : vector<1x32x32xbf16> to vector<32x32xbf16>
    %47 = arith.extf %46 : vector<32x32xbf16> to vector<32x32xf32>
    %cst_24 = arith.constant dense<0.000000e+00> : vector<1x32xf32>
    %48 = tpu.matmul %28, %47, %cst_24 {dimension_numbers = #tpu.dot_dimension_numbers<[1], [0], [0], [1], [0, 0, 1, 1], [], []>} : vector<1x32xf32>, vector<32x32xf32>, vector<1x32xf32> -> vector<1x32xf32>
    %c0_25 = arith.constant 0 : index
    %c88 = arith.constant 88 : index
    %c0_26 = arith.constant 0 : index
    %49 = vector.load %arg4[%c0_25, %c88, %c0_26] : memref<1x152x128xf32, #tpu.memory_space<vmem>>, vector<1x1x32xf32>
    %50 = vector.shape_cast %49 : vector<1x1x32xf32> to vector<1x32xf32>
    %51 = arith.addf %48, %50 : vector<1x32xf32>
    %c0_27 = arith.constant 0 : index
    %c0_28 = arith.constant 0 : index
    %c0_29 = arith.constant 0 : index
    %52 = vector.load %arg2[%c0_27, %c0_28, %c0_29] : memref<1x32x64xbf16, #tpu.memory_space<vmem>>, vector<1x32x64xbf16>
    %53 = vector.shape_cast %52 : vector<1x32x64xbf16> to vector<32x64xbf16>
    %54 = arith.extf %53 : vector<32x64xbf16> to vector<32x64xf32>
    %c0_30 = arith.constant 0 : index
    %c0_31 = arith.constant 0 : index
    %c0_32 = arith.constant 0 : index
    %55 = vector.load %arg4[%c0_30, %c0_31, %c0_32] : memref<1x152x128xf32, #tpu.memory_space<vmem>>, vector<1x1x64xf32>
    %56 = vector.shape_cast %55 : vector<1x1x64xf32> to vector<1x64xf32>
    %c0_33 = arith.constant 0 : index
    %c8 = arith.constant 8 : index
    %c0_34 = arith.constant 0 : index
    %57 = vector.load %arg4[%c0_33, %c8, %c0_34] : memref<1x152x128xf32, #tpu.memory_space<vmem>>, vector<1x1x64xf32>
    %58 = vector.shape_cast %57 : vector<1x1x64xf32> to vector<1x64xf32>
    %cst_35 = arith.constant dense<0.000000e+00> : vector<32xf32>
    %59 = vector.multi_reduction <add>, %54, %cst_35 [1] : vector<32x64xf32> to vector<32xf32>
    %60 = vector.shape_cast %59 : vector<32xf32> to vector<32x1xf32>
    %cst_36 = arith.constant 6.400000e+01 : f32
    %61 = vector.broadcast %cst_36 : f32 to vector<32x1xf32>
    %62 = arith.divf %60, %61 : vector<32x1xf32>
    %63 = vector.broadcast %62 : vector<32x1xf32> to vector<32x64xf32>
    %64 = arith.subf %54, %63 : vector<32x64xf32>
    %65 = arith.mulf %64, %64 : vector<32x64xf32>
    %cst_37 = arith.constant dense<0.000000e+00> : vector<32xf32>
    %66 = vector.multi_reduction <add>, %65, %cst_37 [1] : vector<32x64xf32> to vector<32xf32>
    %67 = vector.shape_cast %66 : vector<32xf32> to vector<32x1xf32>
    %cst_38 = arith.constant 6.400000e+01 : f32
    %68 = vector.broadcast %cst_38 : f32 to vector<32x1xf32>
    %69 = arith.divf %67, %68 : vector<32x1xf32>
    %70 = vector.broadcast %62 : vector<32x1xf32> to vector<32x64xf32>
    %71 = arith.subf %54, %70 : vector<32x64xf32>
    %cst_39 = arith.constant 9.99999974E-6 : f32
    %72 = vector.broadcast %cst_39 : f32 to vector<32x1xf32>
    %73 = arith.addf %69, %72 : vector<32x1xf32>
    %74 = math.rsqrt %73 : vector<32x1xf32>
    %75 = vector.broadcast %74 : vector<32x1xf32> to vector<32x64xf32>
    %76 = arith.mulf %71, %75 : vector<32x64xf32>
    %77 = vector.broadcast %56 : vector<1x64xf32> to vector<32x64xf32>
    %78 = arith.mulf %76, %77 : vector<32x64xf32>
    %79 = vector.broadcast %58 : vector<1x64xf32> to vector<32x64xf32>
    %80 = arith.addf %78, %79 : vector<32x64xf32>
    %81 = arith.truncf %80 : vector<32x64xf32> to vector<32x64xbf16>
    %c0_40 = arith.constant 0 : index
    %c0_41 = arith.constant 0 : index
    %c0_42 = arith.constant 0 : index
    %82 = vector.load %arg3[%c0_40, %c0_41, %c0_42] : memref<1x288x128xbf16, #tpu.memory_space<vmem>>, vector<1x64x32xbf16>
    %83 = vector.shape_cast %82 : vector<1x64x32xbf16> to vector<64x32xbf16>
    %cst_43 = arith.constant dense<0.000000e+00> : vector<32x32xf32>
    %84 = tpu.matmul %81, %83, %cst_43 {dimension_numbers = #tpu.dot_dimension_numbers<[1], [0], [0], [1], [0, 0, 1, 1], [], []>} : vector<32x64xbf16>, vector<64x32xbf16>, vector<32x32xf32> -> vector<32x32xf32>
    %c0_44 = arith.constant 0 : index
    %c16 = arith.constant 16 : index
    %c0_45 = arith.constant 0 : index
    %85 = vector.load %arg4[%c0_44, %c16, %c0_45] : memref<1x152x128xf32, #tpu.memory_space<vmem>>, vector<1x1x32xf32>
    %86 = vector.shape_cast %85 : vector<1x1x32xf32> to vector<1x32xf32>
    %87 = vector.broadcast %86 : vector<1x32xf32> to vector<32x32xf32>
    %88 = arith.addf %84, %87 : vector<32x32xf32>
    %c0_46 = arith.constant 0 : index
    %c24 = arith.constant 24 : index
    %c0_47 = arith.constant 0 : index
    %89 = vector.load %arg4[%c0_46, %c24, %c0_47] : memref<1x152x128xf32, #tpu.memory_space<vmem>>, vector<1x1x32xf32>
    %90 = vector.shape_cast %89 : vector<1x1x32xf32> to vector<1x32xf32>
    %c0_48 = arith.constant 0 : index
    %c32 = arith.constant 32 : index
    %c0_49 = arith.constant 0 : index
    %91 = vector.load %arg4[%c0_48, %c32, %c0_49] : memref<1x152x128xf32, #tpu.memory_space<vmem>>, vector<1x1x32xf32>
    %92 = vector.shape_cast %91 : vector<1x1x32xf32> to vector<1x32xf32>
    %cst_50 = arith.constant dense<0.000000e+00> : vector<32xf32>
    %93 = vector.multi_reduction <add>, %88, %cst_50 [1] : vector<32x32xf32> to vector<32xf32>
    %94 = vector.shape_cast %93 : vector<32xf32> to vector<32x1xf32>
    %cst_51 = arith.constant 3.200000e+01 : f32
    %95 = vector.broadcast %cst_51 : f32 to vector<32x1xf32>
    %96 = arith.divf %94, %95 : vector<32x1xf32>
    %97 = vector.broadcast %96 : vector<32x1xf32> to vector<32x32xf32>
    %98 = arith.subf %88, %97 : vector<32x32xf32>
    %99 = arith.mulf %98, %98 : vector<32x32xf32>
    %cst_52 = arith.constant dense<0.000000e+00> : vector<32xf32>
    %100 = vector.multi_reduction <add>, %99, %cst_52 [1] : vector<32x32xf32> to vector<32xf32>
    %101 = vector.shape_cast %100 : vector<32xf32> to vector<32x1xf32>
    %cst_53 = arith.constant 3.200000e+01 : f32
    %102 = vector.broadcast %cst_53 : f32 to vector<32x1xf32>
    %103 = arith.divf %101, %102 : vector<32x1xf32>
    %104 = vector.broadcast %96 : vector<32x1xf32> to vector<32x32xf32>
    %105 = arith.subf %88, %104 : vector<32x32xf32>
    %cst_54 = arith.constant 9.99999974E-6 : f32
    %106 = vector.broadcast %cst_54 : f32 to vector<32x1xf32>
    %107 = arith.addf %103, %106 : vector<32x1xf32>
    %108 = math.rsqrt %107 : vector<32x1xf32>
    %109 = vector.broadcast %108 : vector<32x1xf32> to vector<32x32xf32>
    %110 = arith.mulf %105, %109 : vector<32x32xf32>
    %111 = vector.broadcast %90 : vector<1x32xf32> to vector<32x32xf32>
    %112 = arith.mulf %110, %111 : vector<32x32xf32>
    %113 = vector.broadcast %92 : vector<1x32xf32> to vector<32x32xf32>
    %114 = arith.addf %112, %113 : vector<32x32xf32>
    %115 = vector.shape_cast %114 : vector<32x32xf32> to vector<8x4x32xf32>
    %c0_55 = arith.constant 0 : index
    %c56 = arith.constant 56 : index
    %c0_56 = arith.constant 0 : index
    %116 = vector.load %arg4[%c0_55, %c56, %c0_56] : memref<1x152x128xf32, #tpu.memory_space<vmem>>, vector<1x4x32xf32>
    %117 = vector.shape_cast %116 : vector<1x4x32xf32> to vector<4x32xf32>
    %118 = vector.shape_cast %117 : vector<4x32xf32> to vector<1x4x32xf32>
    %119 = vector.broadcast %118 : vector<1x4x32xf32> to vector<8x4x32xf32>
    %120 = arith.addf %115, %119 : vector<8x4x32xf32>
    %cst_57 = arith.constant dense<0.000000e+00> : vector<8x4xf32>
    %121 = vector.multi_reduction <add>, %120, %cst_57 [2] : vector<8x4x32xf32> to vector<8x4xf32>
    %122 = vector.shape_cast %121 : vector<8x4xf32> to vector<8x4x1xf32>
    %cst_58 = arith.constant 3.200000e+01 : f32
    %123 = vector.broadcast %cst_58 : f32 to vector<8x4x1xf32>
    %124 = arith.divf %122, %123 : vector<8x4x1xf32>
    %125 = vector.broadcast %124 : vector<8x4x1xf32> to vector<8x4x32xf32>
    %126 = arith.subf %120, %125 : vector<8x4x32xf32>
    %127 = arith.mulf %126, %126 : vector<8x4x32xf32>
    %cst_59 = arith.constant dense<0.000000e+00> : vector<8x4xf32>
    %128 = vector.multi_reduction <add>, %127, %cst_59 [2] : vector<8x4x32xf32> to vector<8x4xf32>
    %129 = vector.shape_cast %128 : vector<8x4xf32> to vector<8x4x1xf32>
    %cst_60 = arith.constant 3.200000e+01 : f32
    %130 = vector.broadcast %cst_60 : f32 to vector<8x4x1xf32>
    %131 = arith.divf %129, %130 : vector<8x4x1xf32>
    %132 = vector.broadcast %124 : vector<8x4x1xf32> to vector<8x4x32xf32>
    %133 = arith.subf %120, %132 : vector<8x4x32xf32>
    %cst_61 = arith.constant 9.99999974E-6 : f32
    %134 = vector.broadcast %cst_61 : f32 to vector<8x4x1xf32>
    %135 = arith.addf %131, %134 : vector<8x4x1xf32>
    %136 = math.rsqrt %135 : vector<8x4x1xf32>
    %137 = vector.broadcast %136 : vector<8x4x1xf32> to vector<8x4x32xf32>
    %138 = arith.mulf %133, %137 : vector<8x4x32xf32>
    %139 = vector.shape_cast %1 : vector<1x32xf32> to vector<1x1x32xf32>
    %140 = vector.broadcast %139 : vector<1x1x32xf32> to vector<8x4x32xf32>
    %141 = arith.mulf %138, %140 : vector<8x4x32xf32>
    %142 = vector.shape_cast %3 : vector<1x32xf32> to vector<1x1x32xf32>
    %143 = vector.broadcast %142 : vector<1x1x32xf32> to vector<8x4x32xf32>
    %144 = arith.addf %141, %143 : vector<8x4x32xf32>
    %145 = vector.shape_cast %144 : vector<8x4x32xf32> to vector<32x32xf32>
    %146 = vector.shape_cast %39 : vector<1x32xf32> to vector<1x1x32xf32>
    %147 = vector.broadcast %146 : vector<1x1x32xf32> to vector<8x4x32xf32>
    %148 = arith.mulf %144, %147 : vector<8x4x32xf32>
    %cst_62 = arith.constant dense<0.000000e+00> : vector<8x4xf32>
    %149 = vector.multi_reduction <add>, %148, %cst_62 [2] : vector<8x4x32xf32> to vector<8x4xf32>
    %cst_63 = arith.constant 0.176776692 : f32
    %150 = vector.broadcast %cst_63 : f32 to vector<8x4xf32>
    %151 = arith.mulf %149, %150 : vector<8x4xf32>
    %152 = arith.truncf %145 : vector<32x32xf32> to vector<32x32xbf16>
    %c0_64 = arith.constant 0 : index
    %c128_65 = arith.constant 128 : index
    %c0_66 = arith.constant 0 : index
    %153 = vector.load %arg3[%c0_64, %c128_65, %c0_66] : memref<1x288x128xbf16, #tpu.memory_space<vmem>>, vector<1x32x32xbf16>
    %154 = vector.shape_cast %153 : vector<1x32x32xbf16> to vector<32x32xbf16>
    %cst_67 = arith.constant dense<0.000000e+00> : vector<32x32xf32>
    %155 = tpu.matmul %152, %154, %cst_67 {dimension_numbers = #tpu.dot_dimension_numbers<[1], [0], [0], [1], [0, 0, 1, 1], [], []>} : vector<32x32xbf16>, vector<32x32xbf16>, vector<32x32xf32> -> vector<32x32xf32>
    %c0_68 = arith.constant 0 : index
    %c88_69 = arith.constant 88 : index
    %c0_70 = arith.constant 0 : index
    %156 = vector.load %arg4[%c0_68, %c88_69, %c0_70] : memref<1x152x128xf32, #tpu.memory_space<vmem>>, vector<1x1x32xf32>
    %157 = vector.shape_cast %156 : vector<1x1x32xf32> to vector<1x32xf32>
    %158 = vector.broadcast %157 : vector<1x32xf32> to vector<32x32xf32>
    %159 = arith.addf %155, %158 : vector<32x32xf32>
    %cst_71 = arith.constant dense<0xFF800000> : vector<8xf32>
    %160 = vector.multi_reduction <maximumf>, %151, %cst_71 [1] : vector<8x4xf32> to vector<8xf32>
    %161 = vector.shape_cast %160 : vector<8xf32> to vector<8x1xf32>
    %162 = vector.broadcast %44 : vector<1x1xf32> to vector<8x1xf32>
    %163 = arith.maximumf %161, %162 : vector<8x1xf32>
    %164 = vector.broadcast %163 : vector<8x1xf32> to vector<8x4xf32>
    %165 = arith.subf %151, %164 : vector<8x4xf32>
    %166 = math.exp %165 : vector<8x4xf32>
    %167 = vector.broadcast %44 : vector<1x1xf32> to vector<8x1xf32>
    %168 = arith.subf %167, %163 : vector<8x1xf32>
    %169 = math.exp %168 : vector<8x1xf32>
    %cst_72 = arith.constant dense<0.000000e+00> : vector<8xf32>
    %170 = vector.multi_reduction <add>, %166, %cst_72 [1] : vector<8x4xf32> to vector<8xf32>
    %171 = vector.shape_cast %170 : vector<8xf32> to vector<8x1xf32>
    %172 = arith.addf %169, %171 : vector<8x1xf32>
    %173 = tpu.reciprocal %172 {approx = true} : vector<8x1xf32> -> vector<8x1xf32>
    %174 = vector.shape_cast %166 : vector<8x4xf32> to vector<8x4x1xf32>
    %175 = vector.shape_cast %159 : vector<32x32xf32> to vector<8x4x32xf32>
    %176 = vector.broadcast %174 : vector<8x4x1xf32> to vector<8x4x32xf32>
    %177 = arith.mulf %176, %175 : vector<8x4x32xf32>
    %cst_73 = arith.constant dense<0.000000e+00> : vector<8x32xf32>
    %178 = vector.multi_reduction <add>, %177, %cst_73 [1] : vector<8x4x32xf32> to vector<8x32xf32>
    %179 = vector.broadcast %169 : vector<8x1xf32> to vector<8x32xf32>
    %180 = vector.broadcast %51 : vector<1x32xf32> to vector<8x32xf32>
    %181 = arith.mulf %179, %180 : vector<8x32xf32>
    %182 = arith.addf %178, %181 : vector<8x32xf32>
    %183 = vector.broadcast %173 : vector<8x1xf32> to vector<8x32xf32>
    %184 = arith.mulf %182, %183 : vector<8x32xf32>
    %185 = arith.truncf %184 : vector<8x32xf32> to vector<8x32xbf16>
    %c0_74 = arith.constant 0 : index
    %c160 = arith.constant 160 : index
    %c0_75 = arith.constant 0 : index
    %186 = vector.load %arg3[%c0_74, %c160, %c0_75] : memref<1x288x128xbf16, #tpu.memory_space<vmem>>, vector<1x32x32xbf16>
    %187 = vector.shape_cast %186 : vector<1x32x32xbf16> to vector<32x32xbf16>
    %cst_76 = arith.constant dense<0.000000e+00> : vector<8x32xf32>
    %188 = tpu.matmul %185, %187, %cst_76 {dimension_numbers = #tpu.dot_dimension_numbers<[1], [0], [0], [1], [0, 0, 1, 1], [], []>} : vector<8x32xbf16>, vector<32x32xbf16>, vector<8x32xf32> -> vector<8x32xf32>
    %c0_77 = arith.constant 0 : index
    %c96_78 = arith.constant 96 : index
    %c0_79 = arith.constant 0 : index
    %189 = vector.load %arg4[%c0_77, %c96_78, %c0_79] : memref<1x152x128xf32, #tpu.memory_space<vmem>>, vector<1x1x32xf32>
    %190 = vector.shape_cast %189 : vector<1x1x32xf32> to vector<1x32xf32>
    %191 = vector.broadcast %190 : vector<1x32xf32> to vector<8x32xf32>
    %192 = arith.addf %188, %191 : vector<8x32xf32>
    %193 = vector.broadcast %8 : vector<1x32xf32> to vector<8x32xf32>
    %194 = arith.addf %193, %192 : vector<8x32xf32>
    %c0_80 = arith.constant 0 : index
    %c104 = arith.constant 104 : index
    %c0_81 = arith.constant 0 : index
    %195 = vector.load %arg4[%c0_80, %c104, %c0_81] : memref<1x152x128xf32, #tpu.memory_space<vmem>>, vector<1x1x32xf32>
    %196 = vector.shape_cast %195 : vector<1x1x32xf32> to vector<1x32xf32>
    %c0_82 = arith.constant 0 : index
    %c112 = arith.constant 112 : index
    %c0_83 = arith.constant 0 : index
    %197 = vector.load %arg4[%c0_82, %c112, %c0_83] : memref<1x152x128xf32, #tpu.memory_space<vmem>>, vector<1x1x32xf32>
    %198 = vector.shape_cast %197 : vector<1x1x32xf32> to vector<1x32xf32>
    %cst_84 = arith.constant dense<0.000000e+00> : vector<8xf32>
    %199 = vector.multi_reduction <add>, %194, %cst_84 [1] : vector<8x32xf32> to vector<8xf32>
    %200 = vector.shape_cast %199 : vector<8xf32> to vector<8x1xf32>
    %cst_85 = arith.constant 3.200000e+01 : f32
    %201 = vector.broadcast %cst_85 : f32 to vector<8x1xf32>
    %202 = arith.divf %200, %201 : vector<8x1xf32>
    %203 = vector.broadcast %202 : vector<8x1xf32> to vector<8x32xf32>
    %204 = arith.subf %194, %203 : vector<8x32xf32>
    %205 = arith.mulf %204, %204 : vector<8x32xf32>
    %cst_86 = arith.constant dense<0.000000e+00> : vector<8xf32>
    %206 = vector.multi_reduction <add>, %205, %cst_86 [1] : vector<8x32xf32> to vector<8xf32>
    %207 = vector.shape_cast %206 : vector<8xf32> to vector<8x1xf32>
    %cst_87 = arith.constant 3.200000e+01 : f32
    %208 = vector.broadcast %cst_87 : f32 to vector<8x1xf32>
    %209 = arith.divf %207, %208 : vector<8x1xf32>
    %210 = vector.broadcast %202 : vector<8x1xf32> to vector<8x32xf32>
    %211 = arith.subf %194, %210 : vector<8x32xf32>
    %cst_88 = arith.constant 9.99999974E-6 : f32
    %212 = vector.broadcast %cst_88 : f32 to vector<8x1xf32>
    %213 = arith.addf %209, %212 : vector<8x1xf32>
    %214 = math.rsqrt %213 : vector<8x1xf32>
    %215 = vector.broadcast %214 : vector<8x1xf32> to vector<8x32xf32>
    %216 = arith.mulf %211, %215 : vector<8x32xf32>
    %217 = vector.broadcast %196 : vector<1x32xf32> to vector<8x32xf32>
    %218 = arith.mulf %216, %217 : vector<8x32xf32>
    %219 = vector.broadcast %198 : vector<1x32xf32> to vector<8x32xf32>
    %220 = arith.addf %218, %219 : vector<8x32xf32>
    %221 = arith.truncf %220 : vector<8x32xf32> to vector<8x32xbf16>
    %c0_89 = arith.constant 0 : index
    %c192 = arith.constant 192 : index
    %c0_90 = arith.constant 0 : index
    %222 = vector.load %arg3[%c0_89, %c192, %c0_90] : memref<1x288x128xbf16, #tpu.memory_space<vmem>>, vector<1x32x64xbf16>
    %223 = vector.shape_cast %222 : vector<1x32x64xbf16> to vector<32x64xbf16>
    %cst_91 = arith.constant dense<0.000000e+00> : vector<8x64xf32>
    %224 = tpu.matmul %221, %223, %cst_91 {dimension_numbers = #tpu.dot_dimension_numbers<[1], [0], [0], [1], [0, 0, 1, 1], [], []>} : vector<8x32xbf16>, vector<32x64xbf16>, vector<8x64xf32> -> vector<8x64xf32>
    %c0_92 = arith.constant 0 : index
    %c120 = arith.constant 120 : index
    %c0_93 = arith.constant 0 : index
    %225 = vector.load %arg4[%c0_92, %c120, %c0_93] : memref<1x152x128xf32, #tpu.memory_space<vmem>>, vector<1x1x64xf32>
    %226 = vector.shape_cast %225 : vector<1x1x64xf32> to vector<1x64xf32>
    %227 = vector.broadcast %226 : vector<1x64xf32> to vector<8x64xf32>
    %228 = arith.addf %224, %227 : vector<8x64xf32>
    %229 = arith.mulf %228, %228 : vector<8x64xf32>
    %230 = arith.mulf %228, %229 : vector<8x64xf32>
    %cst_94 = arith.constant 4.471500e-02 : f32
    %231 = vector.broadcast %cst_94 : f32 to vector<8x64xf32>
    %232 = arith.mulf %231, %230 : vector<8x64xf32>
    %233 = arith.addf %228, %232 : vector<8x64xf32>
    %cst_95 = arith.constant 0.797884583 : f32
    %234 = vector.broadcast %cst_95 : f32 to vector<8x64xf32>
    %235 = arith.mulf %234, %233 : vector<8x64xf32>
    %236 = math.tanh %235 : vector<8x64xf32>
    %cst_96 = arith.constant 1.000000e+00 : f32
    %237 = vector.broadcast %cst_96 : f32 to vector<8x64xf32>
    %238 = arith.addf %237, %236 : vector<8x64xf32>
    %cst_97 = arith.constant 5.000000e-01 : f32
    %239 = vector.broadcast %cst_97 : f32 to vector<8x64xf32>
    %240 = arith.mulf %239, %238 : vector<8x64xf32>
    %241 = arith.mulf %228, %240 : vector<8x64xf32>
    %242 = arith.truncf %241 : vector<8x64xf32> to vector<8x64xbf16>
    %c0_98 = arith.constant 0 : index
    %c224 = arith.constant 224 : index
    %c0_99 = arith.constant 0 : index
    %243 = vector.load %arg3[%c0_98, %c224, %c0_99] : memref<1x288x128xbf16, #tpu.memory_space<vmem>>, vector<1x64x32xbf16>
    %244 = vector.shape_cast %243 : vector<1x64x32xbf16> to vector<64x32xbf16>
    %cst_100 = arith.constant dense<0.000000e+00> : vector<8x32xf32>
    %245 = tpu.matmul %242, %244, %cst_100 {dimension_numbers = #tpu.dot_dimension_numbers<[1], [0], [0], [1], [0, 0, 1, 1], [], []>} : vector<8x64xbf16>, vector<64x32xbf16>, vector<8x32xf32> -> vector<8x32xf32>
    %c0_101 = arith.constant 0 : index
    %c128_102 = arith.constant 128 : index
    %c0_103 = arith.constant 0 : index
    %246 = vector.load %arg4[%c0_101, %c128_102, %c0_103] : memref<1x152x128xf32, #tpu.memory_space<vmem>>, vector<1x1x32xf32>
    %247 = vector.shape_cast %246 : vector<1x1x32xf32> to vector<1x32xf32>
    %248 = vector.broadcast %247 : vector<1x32xf32> to vector<8x32xf32>
    %249 = arith.addf %245, %248 : vector<8x32xf32>
    %250 = arith.addf %194, %249 : vector<8x32xf32>
    %c0_104 = arith.constant 0 : index
    %c136 = arith.constant 136 : index
    %c0_105 = arith.constant 0 : index
    %251 = vector.load %arg4[%c0_104, %c136, %c0_105] : memref<1x152x128xf32, #tpu.memory_space<vmem>>, vector<1x1x32xf32>
    %252 = vector.shape_cast %251 : vector<1x1x32xf32> to vector<1x32xf32>
    %c0_106 = arith.constant 0 : index
    %c144 = arith.constant 144 : index
    %c0_107 = arith.constant 0 : index
    %253 = vector.load %arg4[%c0_106, %c144, %c0_107] : memref<1x152x128xf32, #tpu.memory_space<vmem>>, vector<1x1x32xf32>
    %254 = vector.shape_cast %253 : vector<1x1x32xf32> to vector<1x32xf32>
    %cst_108 = arith.constant dense<0.000000e+00> : vector<8xf32>
    %255 = vector.multi_reduction <add>, %250, %cst_108 [1] : vector<8x32xf32> to vector<8xf32>
    %256 = vector.shape_cast %255 : vector<8xf32> to vector<8x1xf32>
    %cst_109 = arith.constant 3.200000e+01 : f32
    %257 = vector.broadcast %cst_109 : f32 to vector<8x1xf32>
    %258 = arith.divf %256, %257 : vector<8x1xf32>
    %259 = vector.broadcast %258 : vector<8x1xf32> to vector<8x32xf32>
    %260 = arith.subf %250, %259 : vector<8x32xf32>
    %261 = arith.mulf %260, %260 : vector<8x32xf32>
    %cst_110 = arith.constant dense<0.000000e+00> : vector<8xf32>
    %262 = vector.multi_reduction <add>, %261, %cst_110 [1] : vector<8x32xf32> to vector<8xf32>
    %263 = vector.shape_cast %262 : vector<8xf32> to vector<8x1xf32>
    %cst_111 = arith.constant 3.200000e+01 : f32
    %264 = vector.broadcast %cst_111 : f32 to vector<8x1xf32>
    %265 = arith.divf %263, %264 : vector<8x1xf32>
    %266 = vector.broadcast %258 : vector<8x1xf32> to vector<8x32xf32>
    %267 = arith.subf %250, %266 : vector<8x32xf32>
    %cst_112 = arith.constant 9.99999974E-6 : f32
    %268 = vector.broadcast %cst_112 : f32 to vector<8x1xf32>
    %269 = arith.addf %265, %268 : vector<8x1xf32>
    %270 = math.rsqrt %269 : vector<8x1xf32>
    %271 = vector.broadcast %270 : vector<8x1xf32> to vector<8x32xf32>
    %272 = arith.mulf %267, %271 : vector<8x32xf32>
    %273 = vector.broadcast %252 : vector<1x32xf32> to vector<8x32xf32>
    %274 = arith.mulf %272, %273 : vector<8x32xf32>
    %275 = vector.broadcast %254 : vector<1x32xf32> to vector<8x32xf32>
    %276 = arith.addf %274, %275 : vector<8x32xf32>
    %c0_113 = arith.constant 0 : index
    %c0_114 = arith.constant 0 : index
    %c0_115 = arith.constant 0 : index
    %277 = vector.load %arg5[%c0_113, %c0_114, %c0_115] : memref<1x8x32xf32, #tpu.memory_space<vmem>>, vector<1x8x32xf32>
    %278 = vector.shape_cast %277 : vector<1x8x32xf32> to vector<8x32xf32>
    %279 = vector.shape_cast %276 : vector<8x32xf32> to vector<1x8x32xf32>
    tpu.vector_store %arg5[%c0_113, %c0_114, %c0_115], %279 {strides = array<i32>} : memref<1x8x32xf32, #tpu.memory_space<vmem>>, vector<1x8x32xf32>,
    return
  }
  func.func @transform_0(%arg0: i32, %arg1: i32) -> (i32, i32, i32) {
    %c0_i32 = arith.constant 0 : i32
    %c0_i32_0 = arith.constant 0 : i32
    return %arg0, %arg1, %c0_i32 : i32, i32, i32
  }
  func.func @transform_1(%arg0: i32, %arg1: i32) -> (i32, i32, i32) {
    %c0_i32 = arith.constant 0 : i32
    %c0_i32_0 = arith.constant 0 : i32
    %c0_i32_1 = arith.constant 0 : i32
    return %arg0, %c0_i32, %c0_i32_0 : i32, i32, i32
  }
  func.func @transform_2(%arg0: i32, %arg1: i32) -> (i32, i32, i32) {
    %c0_i32 = arith.constant 0 : i32
    %c0_i32_0 = arith.constant 0 : i32
    %c0_i32_1 = arith.constant 0 : i32
    return %arg0, %c0_i32, %c0_i32_0 : i32, i32, i32
  }
  func.func @transform_3(%arg0: i32, %arg1: i32) -> (i32, i32, i32) {
    %c0_i32 = arith.constant 0 : i32
    %c0_i32_0 = arith.constant 0 : i32
    return %arg0, %arg1, %c0_i32 : i32, i32, i32
  }
}

</mosaic_0001>

<llo_original>
// kernel: encoder_vit_forward.1
$region0: #{encoder_vit_forward.1}
  #allocation0 [shape = 'u32[]', space=smem, size = 0x4, offset = 0x4, fixed_abs, tag = 'smem constant byte address 0x4 - core index']
  #allocation1 [shape = 'u32[72,128]{1,0:T(1,128)}', space=vmem, size = 0x9000, scoped, tag = 'internal scratch']
  %s0 = inlined_call_operand.vmem [shape: bf16[2,32,64], index: 0, kind: input, shape index: {}]
  %s1 = inlined_call_operand.vmem [shape: bf16[2,288,128], index: 1, kind: input, shape index: {}]
  %s2 = inlined_call_operand.vmem [shape: f32[2,152,128], index: 2, kind: input, shape index: {}]
  %s3 = inlined_call_operand.vmem [shape: f32[2,8,32], index: 3, kind: output, shape index: {}]
  %s4 = sld [smem:[#allocation0]]
  $region45: #{encoder_vit_forward.1} parent=0
    _
  %s6 = ssub.s32 1, %s4
  %s7 = scalar_select 0, %s6, %s4
  loop: start=0, step=1, limit=4
  $region2: #{encoder_vit_forward.1} parent=0 // loop_pre_header
    _
  $region3: #{encoder_vit_forward.1} parent=0 // loop_header
    %s9 = sphi 0, %s13
    %p10 = scmp.ge.s32.totalorder %s9, 4
    %s16 = sphi 0, %s28
    %s17 = sphi 0, %s24
    %s18 = sphi 0, %s16
    %s19 = sphi 0, %s17
    %s20 = sphi 0, %s18
    %s21 = sphi 0, %s19
    %s33 = sphi 0, %s35
    %s36 = sphi 0, %s33
    %s37 = sphi 0, %s36
    %s53 = sphi 0, %s37
    %s59 = sphi 0, %s61
    %s62 = sphi 0, %s59
    %s63 = sphi 0, %s62
    %s79 = sphi 0, %s63
    %s85 = sphi 0, %s87
    %s88 = sphi 0, %s85
    %s89 = sphi 0, %s88
    %s105 = sphi 0, %s89
    %s113 = sphi 0, %s115
    %s116 = sphi 0, %s113
    %s117 = sphi 0, %s116
    %s133 = sphi 0, %s117
  $region4: #{encoder_vit_forward.1} parent=0 // loop_header_branch
    %12 = sbr.rel (%p10) target = $region8
  $region5: #{encoder_vit_forward.1} parent=0 // loop_body
    %s14 = ssub.s32 %s9, 1
    %s15 = ssub.s32 %s9, 2
    %s22 = sadd.s32 1, %s17
    %p23 = scmp.ge.s32.totalorder %s22, 1
    %s24 = scalar_select %p23, 0, %s22
    %s25 = sadd.s32 1, %s16
    %s26 = scalar_select %p23, %s25, %s16
    %p27 = scmp.ge.s32.totalorder %s26, 2
    %s28 = scalar_select %p27, 0, %s26
    %s29 = ssub.s32 %s16, %s28
    %s30 = ssub.s32 %s17, %s24
    %s31 = sor.u32 %s29, %s30
    %p32 = scmp.eq.s32.totalorder %s31, 0
    %s34 = sadd.s32 %s33, 1
    %s35 = scalar_select %p32, %s33, %s34
    %p38 = pneg %p32
    %p39 = scmp.eq.s32.totalorder %s9, 1
    %p40 = por %p38, %p39
    %p41 = scmp.ne.s32.totalorder %s33, %s36
    %p42 = scmp.eq.s32.totalorder %s9, 0
    %p43 = por %p41, %p42
    %p44 = scmp.ne.s32.totalorder %s33, %s36
    %p45 = scmp.eq.s32.totalorder %s14, 1
    %p46 = por %p44, %p45
    %p47 = scmp.ne.s32.totalorder %s36, %s37
    %p48 = scmp.eq.s32.totalorder %s14, 0
    %p49 = por %p47, %p48
    %p50 = scmp.ne.s32.totalorder %s36, %s37
    %p51 = scmp.eq.s32.totalorder %s15, 1
    %p52 = por %p50, %p51
    %p54 = scmp.ne.s32.totalorder %s37, %s53
    %p55 = scmp.eq.s32.totalorder %s15, 0
    %p56 = por %p54, %p55
    %s57 = ssub.s32 %s16, %s28
    %p58 = scmp.eq.s32.totalorder %s57, 0
    %s60 = sadd.s32 %s59, 1
    %s61 = scalar_select %p58, %s59, %s60
    %p64 = pneg %p58
    %p65 = scmp.eq.s32.totalorder %s9, 1
    %p66 = por %p64, %p65
    %p67 = scmp.ne.s32.totalorder %s59, %s62
    %p68 = scmp.eq.s32.totalorder %s9, 0
    %p69 = por %p67, %p68
    %p70 = scmp.ne.s32.totalorder %s59, %s62
    %p71 = scmp.eq.s32.totalorder %s14, 1
    %p72 = por %p70, %p71
    %p73 = scmp.ne.s32.totalorder %s62, %s63
    %p74 = scmp.eq.s32.totalorder %s14, 0
    %p75 = por %p73, %p74
    %p76 = scmp.ne.s32.totalorder %s62, %s63
    %p77 = scmp.eq.s32.totalorder %s15, 1
    %p78 = por %p76, %p77
    %p80 = scmp.ne.s32.totalorder %s63, %s79
    %p81 = scmp.eq.s32.totalorder %s15, 0
    %p82 = por %p80, %p81
    %s83 = ssub.s32 %s16, %s28
    %p84 = scmp.eq.s32.totalorder %s83, 0
    %s86 = sadd.s32 %s85, 1
    %s87 = scalar_select %p84, %s85, %s86
    %p90 = pneg %p84
    %p91 = scmp.eq.s32.totalorder %s9, 1
    %p92 = por %p90, %p91
    %p93 = scmp.ne.s32.totalorder %s85, %s88
    %p94 = scmp.eq.s32.totalorder %s9, 0
    %p95 = por %p93, %p94
    %p96 = scmp.ne.s32.totalorder %s85, %s88
    %p97 = scmp.eq.s32.totalorder %s14, 1
    %p98 = por %p96, %p97
    %p99 = scmp.ne.s32.totalorder %s88, %s89
    %p100 = scmp.eq.s32.totalorder %s14, 0
    %p101 = por %p99, %p100
    %p102 = scmp.ne.s32.totalorder %s88, %s89
    %p103 = scmp.eq.s32.totalorder %s15, 1
    %p104 = por %p102, %p103
    %p106 = scmp.ne.s32.totalorder %s89, %s105
    %p107 = scmp.eq.s32.totalorder %s15, 0
    %p108 = por %p106, %p107
    %s109 = ssub.s32 %s16, %s28
    %s110 = ssub.s32 %s17, %s24
    %s111 = sor.u32 %s109, %s110
    %p112 = scmp.eq.s32.totalorder %s111, 0
    %s114 = sadd.s32 %s113, 1
    %s115 = scalar_select %p112, %s113, %s114
    %p118 = pneg %p112
    %p119 = scmp.eq.s32.totalorder %s9, 1
    %p120 = por %p118, %p119
    %p121 = scmp.ne.s32.totalorder %s113, %s116
    %p122 = scmp.eq.s32.totalorder %s9, 0
    %p123 = por %p121, %p122
    %p124 = scmp.ne.s32.totalorder %s113, %s116
    %p125 = scmp.eq.s32.totalorder %s14, 1
    %p126 = por %p124, %p125
    %p127 = scmp.ne.s32.totalorder %s116, %s117
    %p128 = scmp.eq.s32.totalorder %s14, 0
    %p129 = por %p127, %p128
    %p130 = scmp.ne.s32.totalorder %s116, %s117
    %p131 = scmp.eq.s32.totalorder %s15, 1
    %p132 = por %p130, %p131
    %p134 = scmp.ne.s32.totalorder %s117, %s133
    %p135 = scmp.eq.s32.totalorder %s15, 0
    %p136 = por %p134, %p135
    %p137 = scmp.le.s32.totalorder 1, %s9
    %p138 = scmp.lt.s32.totalorder %s9, 3
    %p139 = pnand %p137, %p138
    %p140 = pneg %p139
    // Predicated region
    $region9: #{encoder_vit_forward.1} parent=5 // pred_check
      _
    $region10: #{encoder_vit_forward.1} parent=5 // pred_check_branch
      %142 = sbr.rel (%p139) target = $region12
    $region11: #{encoder_vit_forward.1} parent=5 // pred_region
      %s143 = ssub.s32 %s9, 1
    $region12: #{encoder_vit_forward.1} parent=5 // pred_fallthru
      _
    %p144 = scmp.lt.s32.totalorder %s9, 2
    // Predicated region
    $region13: #{encoder_vit_forward.1} parent=5 // pred_check
      %p145 = pneg %p144
    $region14: #{encoder_vit_forward.1} parent=5 // pred_check_branch
      %147 = sbr.rel (%p145) target = $region16
    $region15: #{encoder_vit_forward.1} parent=5 // pred_region
      // Predicated region
      $region17: #{encoder_vit_forward.1} parent=15 // pred_check
        %p148 = pneg %p43
      $region18: #{encoder_vit_forward.1} parent=15 // pred_check_branch
        %150 = sbr.rel (%p148) target = $region20
      $region19: #{encoder_vit_forward.1} parent=15 // pred_region
        %s151 = smul.u32 4, %s17
        %p152 = scmp.lt.s32.totalorder %s16, 1
        %s153 = scalar_select %p152, %s16, 1
        %p154 = scmp.lt.s32.totalorder %s151, 3
        %s155 = scalar_select %p154, %s151, 3
        %s156 = smul.addr %s153, 4
        %s157 = sadd.s32 %s155, %s156
        %s158 = smul.addr %s157, 4
        %s159 = scalar_lea.vmem %s0, %s158
        %s160 = smul.u32 4, %s17
      $region20: #{encoder_vit_forward.1} parent=15 // pred_fallthru
        _
      // Predicated region
      $region21: #{encoder_vit_forward.1} parent=15 // pred_check
        %p161 = pneg %p69
      $region22: #{encoder_vit_forward.1} parent=15 // pred_check_branch
        %163 = sbr.rel (%p161) target = $region24
      $region23: #{encoder_vit_forward.1} parent=15 // pred_region
        %p164 = scmp.lt.s32.totalorder %s16, 1
        %s165 = scalar_select %p164, %s16, 1
        %s166 = smul.addr %s165, 36
        %s167 = smul.addr %s166, 4
        %s168 = scalar_lea.vmem %s1, %s167
      $region24: #{encoder_vit_forward.1} parent=15 // pred_fallthru
        _
      // Predicated region
      $region25: #{encoder_vit_forward.1} parent=15 // pred_check
        %p169 = pneg %p95
      $region26: #{encoder_vit_forward.1} parent=15 // pred_check_branch
        %171 = sbr.rel (%p169) target = $region28
      $region27: #{encoder_vit_forward.1} parent=15 // pred_region
        %p172 = scmp.lt.s32.totalorder %s16, 1
        %s173 = scalar_select %p172, %s16, 1
        %s174 = smul.addr %s173, 19
        %s175 = smul.addr %s174, 8
        %s176 = scalar_lea.vmem %s2, %s175
      $region28: #{encoder_vit_forward.1} parent=15 // pred_fallthru
        _
    $region16: #{encoder_vit_forward.1} parent=5 // pred_fallthru
      _
    %p177 = scmp.le.s32.totalorder 1, %s9
    %p178 = scmp.lt.s32.totalorder %s9, 3
    %p179 = pnand %p177, %p178
    %p180 = pneg %p179
    // Predicated region
    $region29: #{encoder_vit_forward.1} parent=5 // pred_check
      _
    $region30: #{encoder_vit_forward.1} parent=5 // pred_check_branch
      %182 = sbr.rel (%p179) target = $region32
    $region31: #{encoder_vit_forward.1} parent=5 // pred_region
      %s183 = ssub.s32 %s9, 1
      %s184 = smul.u32 4, %s19
      %p185 = scmp.lt.s32.totalorder %s18, 1
      %s186 = scalar_select %p185, %s18, 1
      %p187 = scmp.lt.s32.totalorder %s184, 3
      %s188 = scalar_select %p187, %s184, 3
      %s189 = smul.addr %s186, 4
      %s190 = sadd.s32 %s188, %s189
      %s191 = smul.addr %s190, 4
      %s192 = scalar_lea.vmem %s0, %s191
      %p193 = pneg %p49
      %p194 = pneg %p46
      %p195 = scmp.lt.s32.totalorder %s18, 1
      %s196 = scalar_select %p195, %s18, 1
      %s197 = smul.addr %s196, 36
      %s198 = smul.addr %s197, 4
      %s199 = scalar_lea.vmem %s1, %s198
      %p200 = pneg %p75
      %p201 = pneg %p72
      %p202 = scmp.lt.s32.totalorder %s18, 1
      %s203 = scalar_select %p202, %s18, 1
      %s204 = smul.addr %s203, 19
      %s205 = smul.addr %s204, 8
      %s206 = scalar_lea.vmem %s2, %s205
      %p207 = pneg %p101
      %p208 = pneg %p98
      %p209 = pneg %p129
      %p210 = pneg %p126
      %p211 = scmp.lt.s32.totalorder %s18, 1
      %s212 = scalar_select %p211, %s18, 1
      %p213 = scmp.lt.s32.totalorder %s19, 0
      %s214 = scalar_select %p213, %s19, 0
      %s215 = sadd.s32 %s214, %s212
      %s216 = smul.addr %s215, 8
      %s217 = scalar_lea.vmem %s3, %s216
      %s218 = smul.u32 4, %s19
      %p219 = scmp.lt.s32.totalorder %s18, 1
      %s220 = scalar_select %p219, %s18, 1
      %p221 = scmp.lt.s32.totalorder %s218, 3
      %s222 = scalar_select %p221, %s218, 3
      %s223 = smul.addr %s220, 4
      %s224 = sadd.s32 %s222, %s223
      %s225 = smul.addr %s224, 4
      %s226 = scalar_lea.vmem %s0, %s225
      %s227 = smul.u32 4, %s19
      %p228 = scmp.lt.s32.totalorder %s18, 1
      %s229 = scalar_select %p228, %s18, 1
      %s230 = smul.addr %s229, 36
      %s231 = smul.addr %s230, 4
      %s232 = scalar_lea.vmem %s1, %s231
      %p233 = scmp.lt.s32.totalorder %s18, 1
      %s234 = scalar_select %p233, %s18, 1
      %s235 = smul.addr %s234, 19
      %s236 = smul.addr %s235, 8
      %s237 = scalar_lea.vmem %s2, %s236
      %p238 = scmp.lt.s32.totalorder %s18, 1
      %s239 = scalar_select %p238, %s18, 1
      %p240 = scmp.lt.s32.totalorder %s19, 0
      %s241 = scalar_select %p240, %s19, 0
      %s242 = sadd.s32 %s241, %s239
      %s243 = smul.addr %s242, 8
      %s244 = scalar_lea.vmem %s3, %s243
      %v246 = vld [vmem:[%s237 + $0x40] sm:$0x1]
      %v247 = vld [vmem:[%s237 + $0x48] sm:$0x1]
      %v248 = vld [vmem:[%s237 + $0x28] sm:$0x1]
      %v249 = vld [vmem:[%s237 + $0x30] sm:$0x1]
      %v250 = vadd.f32 %v248, %v249
      %vm251 = vcmask 253952
      %v252 = vsel %vm251, %v250, 0.0
      %253 = vadd.xlane.f32.xlu0 %v252
      %v254 = vpop.xlane.xlu0 %253
      %v255 = vrcp.pop 32.0
      %v256 = vmul.f32 32.0, %v255
      %v257 = vsub.f32 1.0, %v256
      %v258 = vmul.f32 %v255, %v257
      %v259 = vadd.f32 %v255, %v258
      %vm260 = vweird.f32 %v255
      %v261 = vsel %vm260, %v255, %v259
      %v262 = vmul.f32 %v254, %v261
      %v263 = vsub.f32 %v250, %v262
      %v264 = vmul.f32 %v263, %v263
      %v265 = vsel %vm251, %v264, 0.0
      %266 = vadd.xlane.f32.xlu0 %v265
      %v267 = vpop.xlane.xlu0 %266
      %v268 = vmul.f32 %v267, %v261
      %v269 = vadd.f32 %v268, 1e-05
      %v270 = vrsqrt.pop %v269
      %v271 = vmul.f32 %v270, %v269
      %v272 = vmul.f32 %v271, %v270
      %v273 = vmul.f32 0.5, %v272
      %v274 = vsub.f32 1.5, %v273
      %v275 = vmul.f32 %v270, %v274
      %vm276 = vweird.f32 %v269
      %vm277 = vweird.f32 %v270
      %vm278 = vmor %vm276, %vm277
      %v279 = vsel %vm278, %v270, %v275
      %v280 = vmul.f32 %v263, %v279
      %v281 = vmul.f32 %v280, %v246
      %v282 = vadd.f32 %v281, %v247
      %v283 = vld [vmem:[%s232 + $0x20] sm:$0xf]
      %v284 = vld [vmem:[%s232 + $0x24] sm:$0xf]
      %v285 = vld [vmem:[%s232 + $0x28] sm:$0xf]
      %v286 = vld [vmem:[%s232 + $0x2c] sm:$0xf]
      %v287 = vunpack.c.l.bf16 %v283
      %v288 = vunpack.c.l.bf16 %v284
      %v289 = vunpack.c.l.bf16 %v285
      %v290 = vunpack.c.l.bf16 %v286
      %v291 = vld [vmem:[%s237 + $0x50] sm:$0x1]
      %vm292 = vcmask 261120
      %v294 = vsel %vm292, %v282, 0
      %296 = vmatpush.msra.mxu0 0.0
      %297 = vmatpush.msra.mxu0 0.0
      %298 = vmatpush.msra.mxu0 0.0
      %299 = vmatpush.msra.mxu0 0.0
      %300 = vmatpush.msra.mxu0 0.0
      %301 = vmatpush.msra.mxu0 0.0
      %302 = vmatpush.msra.mxu0 0.0
      %303 = vmatpush.msra.mxu0 0.0
      %304 = vmatpush.msra.mxu0 0.0
      %305 = vmatpush.msra.mxu0 0.0
      %306 = vmatpush.msra.mxu0 0.0
      %307 = vmatpush.msra.mxu0 0.0
      %308 = vmatpush.msra.mxu0 %v290
      %309 = vmatpush.msra.mxu0 %v289
      %310 = vmatpush.msra.mxu0 %v288
      %311 = vmatpush.msra.mxu0 %v287
      %312 = vmatmul.f32.gmra.mxu0 %v294
      %v313 = vpop.f32.mrf.mxu0
      %v314 = vadd.f32 %v291, %v313
      %315 = vdwg.mxu0
      %v316 = vld [vmem:[%s232 + $0x30] sm:$0xf]
      %v317 = vld [vmem:[%s232 + $0x34] sm:$0xf]
      %v318 = vld [vmem:[%s232 + $0x38] sm:$0xf]
      %v319 = vld [vmem:[%s232 + $0x3c] sm:$0xf]
      %v320 = vunpack.c.l.bf16 %v316
      %v321 = vunpack.c.l.bf16 %v317
      %v322 = vunpack.c.l.bf16 %v318
      %v323 = vunpack.c.l.bf16 %v319
      %v325 = vsel %vm292, %v314, 0
      %327 = vmatpush.msra.mxu0 0.0
      %328 = vmatpush.msra.mxu0 0.0
      %329 = vmatpush.msra.mxu0 0.0
      %330 = vmatpush.msra.mxu0 0.0
      %331 = vmatpush.msra.mxu0 0.0
      %332 = vmatpush.msra.mxu0 0.0
      %333 = vmatpush.msra.mxu0 0.0
      %334 = vmatpush.msra.mxu0 0.0
      %335 = vmatpush.msra.mxu0 0.0
      %336 = vmatpush.msra.mxu0 0.0
      %337 = vmatpush.msra.mxu0 0.0
      %338 = vmatpush.msra.mxu0 0.0
      %339 = vmatpush.msra.mxu0 %v323
      %340 = vmatpush.msra.mxu0 %v322
      %341 = vmatpush.msra.mxu0 %v321
      %342 = vmatpush.msra.mxu0 %v320
      %343 = vmatmul.f32.gmra.mxu0 %v325
      %v344 = vpop.f32.mrf.mxu0
      %v345 = vadd.f32 0.0, %v344
      %346 = vdwg.mxu0
      %v347 = vmul.f32 %v282, %v345
      %v348 = vsel %vm251, %v347, 0.0
      %349 = vadd.xlane.f32.xlu0 %v348
      %v350 = vpop.xlane.xlu0 %349
      %v351 = vmul.f32 %v350, 0.17677669
      %v352 = vld [vmem:[%s232 + $0x40] sm:$0xf]
      %v353 = vld [vmem:[%s232 + $0x44] sm:$0xf]
      %v354 = vld [vmem:[%s232 + $0x48] sm:$0xf]
      %v355 = vld [vmem:[%s232 + $0x4c] sm:$0xf]
      %v356 = vunpack.c.l.bf16 %v352
      %v357 = vunpack.c.l.bf16 %v353
      %v358 = vunpack.c.l.bf16 %v354
      %v359 = vunpack.c.l.bf16 %v355
      %v360 = vld [vmem:[%s237 + $0x58] sm:$0x1]
      %361 = vmatpush.msra.mxu0 0.0
      %362 = vmatpush.msra.mxu0 0.0
      %363 = vmatpush.msra.mxu0 0.0
      %364 = vmatpush.msra.mxu0 0.0
      %365 = vmatpush.msra.mxu0 0.0
      %366 = vmatpush.msra.mxu0 0.0
      %367 = vmatpush.msra.mxu0 0.0
      %368 = vmatpush.msra.mxu0 0.0
      %369 = vmatpush.msra.mxu0 0.0
      %370 = vmatpush.msra.mxu0 0.0
      %371 = vmatpush.msra.mxu0 0.0
      %372 = vmatpush.msra.mxu0 0.0
      %373 = vmatpush.msra.mxu0 %v359
      %374 = vmatpush.msra.mxu0 %v358
      %375 = vmatpush.msra.mxu0 %v357
      %376 = vmatpush.msra.mxu0 %v356
      %377 = vmatmul.f32.gmra.mxu0 %v294
      %v378 = vpop.f32.mrf.mxu0
      %v379 = vadd.f32 %v360, %v378
      %380 = vdwg.mxu0
      %v381 = vld [vmem:[%s226] sm:$0xf]
      %v382 = vld [vmem:[%s226 + $0x4] sm:$0xf]
      %v383 = vld [vmem:[%s226 + $0x8] sm:$0xf]
      %v384 = vld [vmem:[%s226 + $0xc] sm:$0xf]
      %v385 = vunpack.c.l.bf16 %v381
      %v386 = vunpack.c.l.bf16 %v382
      %v387 = vunpack.c.l.bf16 %v383
      %v388 = vunpack.c.l.bf16 %v384
      %v389 = vld [vmem:[%s237] sm:$0x1]
      %v390 = vld [vmem:[%s237 + $0x8] sm:$0x1]
      %vm391 = vcmask 523264
      %v392 = vsel %vm391, %v385, 0.0
      %393 = vadd.xlane.f32.xlu0 %v392
      %v394 = vpop.xlane.xlu0 %393
      %v395 = vsel %vm391, %v386, 0.0
      %396 = vadd.xlane.f32.xlu0 %v395
      %v397 = vpop.xlane.xlu0 %396
      %v398 = vsel %vm391, %v387, 0.0
      %399 = vadd.xlane.f32.xlu0 %v398
      %v400 = vpop.xlane.xlu0 %399
      %v401 = vsel %vm391, %v388, 0.0
      %402 = vadd.xlane.f32.xlu0 %v401
      %v403 = vpop.xlane.xlu0 %402
      %v404 = vrcp.pop 64.0
      %v405 = vmul.f32 64.0, %v404
      %v406 = vsub.f32 1.0, %v405
      %v407 = vmul.f32 %v404, %v406
      %v408 = vadd.f32 %v404, %v407
      %vm409 = vweird.f32 %v404
      %v410 = vsel %vm409, %v404, %v408
      %v411 = vmul.f32 %v394, %v410
      %v412 = vmul.f32 %v397, %v410
      %v413 = vmul.f32 %v400, %v410
      %v414 = vmul.f32 %v403, %v410
      %v415 = vsub.f32 %v385, %v411
      %v416 = vsub.f32 %v386, %v412
      %v417 = vsub.f32 %v387, %v413
      %v418 = vsub.f32 %v388, %v414
      %v419 = vmul.f32 %v415, %v415
      %v420 = vmul.f32 %v416, %v416
      %v421 = vmul.f32 %v417, %v417
      %v422 = vmul.f32 %v418, %v418
      %v423 = vsel %vm391, %v419, 0.0
      %424 = vadd.xlane.f32.xlu0 %v423
      %v425 = vpop.xlane.xlu0 %424
      %v426 = vsel %vm391, %v420, 0.0
      %427 = vadd.xlane.f32.xlu0 %v426
      %v428 = vpop.xlane.xlu0 %427
      %v429 = vsel %vm391, %v421, 0.0
      %430 = vadd.xlane.f32.xlu0 %v429
      %v431 = vpop.xlane.xlu0 %430
      %v432 = vsel %vm391, %v422, 0.0
      %433 = vadd.xlane.f32.xlu0 %v432
      %v434 = vpop.xlane.xlu0 %433
      %v435 = vmul.f32 %v425, %v410
      %v436 = vmul.f32 %v428, %v410
      %v437 = vmul.f32 %v431, %v410
      %v438 = vmul.f32 %v434, %v410
      %v439 = vadd.f32 %v435, 1e-05
      %v440 = vadd.f32 %v436, 1e-05
      %v441 = vadd.f32 %v437, 1e-05
      %v442 = vadd.f32 %v438, 1e-05
      %v443 = vrsqrt.pop %v439
      %v444 = vmul.f32 %v443, %v439
      %v445 = vmul.f32 %v444, %v443
      %v446 = vmul.f32 0.5, %v445
      %v447 = vsub.f32 1.5, %v446
      %v448 = vmul.f32 %v443, %v447
      %vm449 = vweird.f32 %v439
      %vm450 = vweird.f32 %v443
      %vm451 = vmor %vm449, %vm450
      %v452 = vsel %vm451, %v443, %v448
      %v453 = vrsqrt.pop %v440
      %v454 = vmul.f32 %v453, %v440
      %v455 = vmul.f32 %v454, %v453
      %v456 = vmul.f32 0.5, %v455
      %v457 = vsub.f32 1.5, %v456
      %v458 = vmul.f32 %v453, %v457
      %vm459 = vweird.f32 %v440
      %vm460 = vweird.f32 %v453
      %vm461 = vmor %vm459, %vm460
      %v462 = vsel %vm461, %v453, %v458
      %v463 = vrsqrt.pop %v441
      %v464 = vmul.f32 %v463, %v441
      %v465 = vmul.f32 %v464, %v463
      %v466 = vmul.f32 0.5, %v465
      %v467 = vsub.f32 1.5, %v466
      %v468 = vmul.f32 %v463, %v467
      %vm469 = vweird.f32 %v441
      %vm470 = vweird.f32 %v463
      %vm471 = vmor %vm469, %vm470
      %v472 = vsel %vm471, %v463, %v468
      %v473 = vrsqrt.pop %v442
      %v474 = vmul.f32 %v473, %v442
      %v475 = vmul.f32 %v474, %v473
      %v476 = vmul.f32 0.5, %v475
      %v477 = vsub.f32 1.5, %v476
      %v478 = vmul.f32 %v473, %v477
      %vm479 = vweird.f32 %v442
      %vm480 = vweird.f32 %v473
      %vm481 = vmor %vm479, %vm480
      %v482 = vsel %vm481, %v473, %v478
      %v483 = vmul.f32 %v415, %v452
      %v484 = vmul.f32 %v416, %v462
      %v485 = vmul.f32 %v417, %v472
      %v486 = vmul.f32 %v418, %v482
      %v487 = vperm.slane %v389, 0
      %v488 = vmul.f32 %v483, %v487
      %v489 = vmul.f32 %v484, %v487
      %v490 = vmul.f32 %v485, %v487
      %v491 = vmul.f32 %v486, %v487
      %v492 = vperm.slane %v390, 0
      %v493 = vadd.f32 %v488, %v492
      %v494 = vadd.f32 %v489, %v492
      %v495 = vadd.f32 %v490, %v492
      %v496 = vadd.f32 %v491, %v492
      %v497 = vpack.c.bf16 %v494, %v493
      %v498 = vpack.c.bf16 %v496, %v495
      %v499 = vld [vmem:[%s232] sm:$0xf]
      %v500 = vld [vmem:[%s232 + $0x4] sm:$0xf]
      %v501 = vld [vmem:[%s232 + $0x8] sm:$0xf]
      %v502 = vld [vmem:[%s232 + $0xc] sm:$0xf]
      %v503 = vld [vmem:[%s232 + $0x10] sm:$0xf]
      %v504 = vld [vmem:[%s232 + $0x14] sm:$0xf]
      %v505 = vld [vmem:[%s232 + $0x18] sm:$0xf]
      %v506 = vld [vmem:[%s232 + $0x1c] sm:$0xf]
      %v507 = vld [vmem:[%s237 + $0x10] sm:$0x1]
      %v508 = vperm.slane %v507, 0
      %v517 = vunpack.c.l.b16 %v499
      %v518 = vunpack.c.l.b16 %v500
      %v519 = vunpack.c.l.b16 %v501
      %v520 = vunpack.c.l.b16 %v502
      %v521 = vunpack.c.l.b16 %v503
      %v522 = vunpack.c.l.b16 %v504
      %v523 = vunpack.c.l.b16 %v505
      %v524 = vunpack.c.l.b16 %v506
      %v525 = vpack.c.b16 %v518, %v517
      %v526 = vpack.c.b16 %v520, %v519
      %v527 = vpack.c.b16 %v522, %v521
      %v528 = vpack.c.b16 %v524, %v523
      %v534 = vsel %vm391, %v497, 0
      %v537 = vsel %vm391, %v498, 0
      %539 = vmatpush.bf16.msra.mxu0 0
      %540 = vmatpush.bf16.msra.mxu0 0
      %541 = vmatpush.bf16.msra.mxu0 0
      %542 = vmatpush.bf16.msra.mxu0 0
      %543 = vmatpush.bf16.msra.mxu0 %v528
      %544 = vmatpush.bf16.msra.mxu0 %v527
      %545 = vmatpush.bf16.msra.mxu0 %v526
      %546 = vmatpush.bf16.msra.mxu0 %v525
      %547 = vmatmul.bf16.gmra.mxu0 %v534
      %v548 = vpop.f32.mrf.mxu0
      %v549 = vadd.f32 %v508, %v548
      %v550 = vpop.f32.mrf.mxu0
      %v551 = vadd.f32 %v508, %v550
      %552 = vmatmul.bf16.gmra.mxu0 %v537
      %v553 = vpop.f32.mrf.mxu0
      %v554 = vadd.f32 %v508, %v553
      %v555 = vpop.f32.mrf.mxu0
      %v556 = vadd.f32 %v508, %v555
      %557 = vdwg.mxu0
      %v558 = vld [vmem:[%s237 + $0x18] sm:$0x1]
      %v559 = vld [vmem:[%s237 + $0x20] sm:$0x1]
      %v560 = vsel %vm292, %v549, 0.0
      %561 = vadd.xlane.f32.xlu0 %v560
      %v562 = vpop.xlane.xlu0 %561
      %v563 = vsel %vm292, %v551, 0.0
      %564 = vadd.xlane.f32.xlu0 %v563
      %v565 = vpop.xlane.xlu0 %564
      %v566 = vsel %vm292, %v554, 0.0
      %567 = vadd.xlane.f32.xlu0 %v566
      %v568 = vpop.xlane.xlu0 %567
      %v569 = vsel %vm292, %v556, 0.0
      %570 = vadd.xlane.f32.xlu0 %v569
      %v571 = vpop.xlane.xlu0 %570
      %v572 = vmul.f32 %v562, %v261
      %v573 = vmul.f32 %v565, %v261
      %v574 = vmul.f32 %v568, %v261
      %v575 = vmul.f32 %v571, %v261
      %v576 = vsub.f32 %v549, %v572
      %v577 = vsub.f32 %v551, %v573
      %v578 = vsub.f32 %v554, %v574
      %v579 = vsub.f32 %v556, %v575
      %v580 = vmul.f32 %v576, %v576
      %v581 = vmul.f32 %v577, %v577
      %v582 = vmul.f32 %v578, %v578
      %v583 = vmul.f32 %v579, %v579
      %v584 = vsel %vm292, %v580, 0.0
      %585 = vadd.xlane.f32.xlu0 %v584
      %v586 = vpop.xlane.xlu0 %585
      %v587 = vsel %vm292, %v581, 0.0
      %588 = vadd.xlane.f32.xlu0 %v587
      %v589 = vpop.xlane.xlu0 %588
      %v590 = vsel %vm292, %v582, 0.0
      %591 = vadd.xlane.f32.xlu0 %v590
      %v592 = vpop.xlane.xlu0 %591
      %v593 = vsel %vm292, %v583, 0.0
      %594 = vadd.xlane.f32.xlu0 %v593
      %v595 = vpop.xlane.xlu0 %594
      %v596 = vmul.f32 %v586, %v261
      %v597 = vmul.f32 %v589, %v261
      %v598 = vmul.f32 %v592, %v261
      %v599 = vmul.f32 %v595, %v261
      %v600 = vadd.f32 %v596, 1e-05
      %v601 = vadd.f32 %v597, 1e-05
      %v602 = vadd.f32 %v598, 1e-05
      %v603 = vadd.f32 %v599, 1e-05
      %v604 = vrsqrt.pop %v600
      %v605 = vmul.f32 %v604, %v600
      %v606 = vmul.f32 %v605, %v604
      %v607 = vmul.f32 0.5, %v606
      %v608 = vsub.f32 1.5, %v607
      %v609 = vmul.f32 %v604, %v608
      %vm610 = vweird.f32 %v600
      %vm611 = vweird.f32 %v604
      %vm612 = vmor %vm610, %vm611
      %v613 = vsel %vm612, %v604, %v609
      %v614 = vrsqrt.pop %v601
      %v615 = vmul.f32 %v614, %v601
      %v616 = vmul.f32 %v615, %v614
      %v617 = vmul.f32 0.5, %v616
      %v618 = vsub.f32 1.5, %v617
      %v619 = vmul.f32 %v614, %v618
      %vm620 = vweird.f32 %v601
      %vm621 = vweird.f32 %v614
      %vm622 = vmor %vm620, %vm621
      %v623 = vsel %vm622, %v614, %v619
      %v624 = vrsqrt.pop %v602
      %v625 = vmul.f32 %v624, %v602
      %v626 = vmul.f32 %v625, %v624
      %v627 = vmul.f32 0.5, %v626
      %v628 = vsub.f32 1.5, %v627
      %v629 = vmul.f32 %v624, %v628
      %vm630 = vweird.f32 %v602
      %vm631 = vweird.f32 %v624
      %vm632 = vmor %vm630, %vm631
      %v633 = vsel %vm632, %v624, %v629
      %v634 = vrsqrt.pop %v603
      %v635 = vmul.f32 %v634, %v603
      %v636 = vmul.f32 %v635, %v634
      %v637 = vmul.f32 0.5, %v636
      %v638 = vsub.f32 1.5, %v637
      %v639 = vmul.f32 %v634, %v638
      %vm640 = vweird.f32 %v603
      %vm641 = vweird.f32 %v634
      %vm642 = vmor %vm640, %vm641
      %v643 = vsel %vm642, %v634, %v639
      %v644 = vmul.f32 %v576, %v613
      %v645 = vmul.f32 %v577, %v623
      %v646 = vmul.f32 %v578, %v633
      %v647 = vmul.f32 %v579, %v643
      %v648 = vperm.slane %v558, 0
      %v649 = vmul.f32 %v644, %v648
      %v650 = vmul.f32 %v645, %v648
      %v651 = vmul.f32 %v646, %v648
      %v652 = vmul.f32 %v647, %v648
      %v653 = vperm.slane %v559, 0
      %v654 = vadd.f32 %v649, %v653
      %v655 = vadd.f32 %v650, %v653
      %v656 = vadd.f32 %v651, %v653
      %v657 = vadd.f32 %v652, %v653
      %v662 = vrot.slane %v654, 4
      %v663 = vrot.slane %v655, 4
      %v664 = vrot.slane %v656, 4
      %v665 = vrot.slane %v657, 4
      %v670 = vld [vmem:[%s237 + $0x38] sm:$0xf]
      %v671 = vadd.f32 %v654, %v670
      %v672 = vadd.f32 %v662, %v670
      %v673 = vadd.f32 %v655, %v670
      %v674 = vadd.f32 %v663, %v670
      %v675 = vadd.f32 %v656, %v670
      %v676 = vadd.f32 %v664, %v670
      %v677 = vadd.f32 %v657, %v670
      %v678 = vadd.f32 %v665, %v670
      %vm679 = vcmask 257024
      %v680 = vsel %vm679, %v671, 0.0
      %681 = vadd.xlane.f32.xlu0 %v680
      %v682 = vpop.xlane.xlu0 %681
      %v683 = vsel %vm679, %v672, 0.0
      %684 = vadd.xlane.f32.xlu0 %v683
      %v685 = vpop.xlane.xlu0 %684
      %v686 = vsel %vm679, %v673, 0.0
      %687 = vadd.xlane.f32.xlu0 %v686
      %v688 = vpop.xlane.xlu0 %687
      %v689 = vsel %vm679, %v674, 0.0
      %690 = vadd.xlane.f32.xlu0 %v689
      %v691 = vpop.xlane.xlu0 %690
      %v692 = vsel %vm679, %v675, 0.0
      %693 = vadd.xlane.f32.xlu0 %v692
      %v694 = vpop.xlane.xlu0 %693
      %v695 = vsel %vm679, %v676, 0.0
      %696 = vadd.xlane.f32.xlu0 %v695
      %v697 = vpop.xlane.xlu0 %696
      %v698 = vsel %vm679, %v677, 0.0
      %699 = vadd.xlane.f32.xlu0 %v698
      %v700 = vpop.xlane.xlu0 %699
      %v701 = vsel %vm679, %v678, 0.0
      %702 = vadd.xlane.f32.xlu0 %v701
      %v703 = vpop.xlane.xlu0 %702
      %v704 = vmul.f32 %v682, %v261
      %v705 = vmul.f32 %v685, %v261
      %v706 = vmul.f32 %v688, %v261
      %v707 = vmul.f32 %v691, %v261
      %v708 = vmul.f32 %v694, %v261
      %v709 = vmul.f32 %v697, %v261
      %v710 = vmul.f32 %v700, %v261
      %v711 = vmul.f32 %v703, %v261
      %v712 = vsub.f32 %v671, %v704
      %v713 = vsub.f32 %v672, %v705
      %v714 = vsub.f32 %v673, %v706
      %v715 = vsub.f32 %v674, %v707
      %v716 = vsub.f32 %v675, %v708
      %v717 = vsub.f32 %v676, %v709
      %v718 = vsub.f32 %v677, %v710
      %v719 = vsub.f32 %v678, %v711
      %v720 = vmul.f32 %v712, %v712
      %v721 = vmul.f32 %v713, %v713
      %v722 = vmul.f32 %v714, %v714
      %v723 = vmul.f32 %v715, %v715
      %v724 = vmul.f32 %v716, %v716
      %v725 = vmul.f32 %v717, %v717
      %v726 = vmul.f32 %v718, %v718
      %v727 = vmul.f32 %v719, %v719
      %v728 = vsel %vm679, %v720, 0.0
      %729 = vadd.xlane.f32.xlu0 %v728
      %v730 = vpop.xlane.xlu0 %729
      %v731 = vsel %vm679, %v721, 0.0
      %732 = vadd.xlane.f32.xlu0 %v731
      %v733 = vpop.xlane.xlu0 %732
      %v734 = vsel %vm679, %v722, 0.0
      %735 = vadd.xlane.f32.xlu0 %v734
      %v736 = vpop.xlane.xlu0 %735
      %v737 = vsel %vm679, %v723, 0.0
      %738 = vadd.xlane.f32.xlu0 %v737
      %v739 = vpop.xlane.xlu0 %738
      %v740 = vsel %vm679, %v724, 0.0
      %741 = vadd.xlane.f32.xlu0 %v740
      %v742 = vpop.xlane.xlu0 %741
      %v743 = vsel %vm679, %v725, 0.0
      %744 = vadd.xlane.f32.xlu0 %v743
      %v745 = vpop.xlane.xlu0 %744
      %v746 = vsel %vm679, %v726, 0.0
      %747 = vadd.xlane.f32.xlu0 %v746
      %v748 = vpop.xlane.xlu0 %747
      %v749 = vsel %vm679, %v727, 0.0
      %750 = vadd.xlane.f32.xlu0 %v749
      %v751 = vpop.xlane.xlu0 %750
      %v752 = vmul.f32 %v730, %v261
      %v753 = vmul.f32 %v733, %v261
      %v754 = vmul.f32 %v736, %v261
      %v755 = vmul.f32 %v739, %v261
      %v756 = vmul.f32 %v742, %v261
      %v757 = vmul.f32 %v745, %v261
      %v758 = vmul.f32 %v748, %v261
      %v759 = vmul.f32 %v751, %v261
      %v760 = vadd.f32 %v752, 1e-05
      %v761 = vadd.f32 %v753, 1e-05
      %v762 = vadd.f32 %v754, 1e-05
      %v763 = vadd.f32 %v755, 1e-05
      %v764 = vadd.f32 %v756, 1e-05
      %v765 = vadd.f32 %v757, 1e-05
      %v766 = vadd.f32 %v758, 1e-05
      %v767 = vadd.f32 %v759, 1e-05
      %v768 = vrsqrt.pop %v760
      %v769 = vmul.f32 %v768, %v760
      %v770 = vmul.f32 %v769, %v768
      %v771 = vmul.f32 0.5, %v770
      %v772 = vsub.f32 1.5, %v771
      %v773 = vmul.f32 %v768, %v772
      %vm774 = vweird.f32 %v760
      %vm775 = vweird.f32 %v768
      %vm776 = vmor %vm774, %vm775
      %v777 = vsel %vm776, %v768, %v773
      %v778 = vrsqrt.pop %v761
      %v779 = vmul.f32 %v778, %v761
      %v780 = vmul.f32 %v779, %v778
      %v781 = vmul.f32 0.5, %v780
      %v782 = vsub.f32 1.5, %v781
      %v783 = vmul.f32 %v778, %v782
      %vm784 = vweird.f32 %v761
      %vm785 = vweird.f32 %v778
      %vm786 = vmor %vm784, %vm785
      %v787 = vsel %vm786, %v778, %v783
      %v788 = vrsqrt.pop %v762
      %v789 = vmul.f32 %v788, %v762
      %v790 = vmul.f32 %v789, %v788
      %v791 = vmul.f32 0.5, %v790
      %v792 = vsub.f32 1.5, %v791
      %v793 = vmul.f32 %v788, %v792
      %vm794 = vweird.f32 %v762
      %vm795 = vweird.f32 %v788
      %vm796 = vmor %vm794, %vm795
      %v797 = vsel %vm796, %v788, %v793
      %v798 = vrsqrt.pop %v763
      %v799 = vmul.f32 %v798, %v763
      %v800 = vmul.f32 %v799, %v798
      %v801 = vmul.f32 0.5, %v800
      %v802 = vsub.f32 1.5, %v801
      %v803 = vmul.f32 %v798, %v802
      %vm804 = vweird.f32 %v763
      %vm805 = vweird.f32 %v798
      %vm806 = vmor %vm804, %vm805
      %v807 = vsel %vm806, %v798, %v803
      %v808 = vrsqrt.pop %v764
      %v809 = vmul.f32 %v808, %v764
      %v810 = vmul.f32 %v809, %v808
      %v811 = vmul.f32 0.5, %v810
      %v812 = vsub.f32 1.5, %v811
      %v813 = vmul.f32 %v808, %v812
      %vm814 = vweird.f32 %v764
      %vm815 = vweird.f32 %v808
      %vm816 = vmor %vm814, %vm815
      %v817 = vsel %vm816, %v808, %v813
      %v818 = vrsqrt.pop %v765
      %v819 = vmul.f32 %v818, %v765
      %v820 = vmul.f32 %v819, %v818
      %v821 = vmul.f32 0.5, %v820
      %v822 = vsub.f32 1.5, %v821
      %v823 = vmul.f32 %v818, %v822
      %vm824 = vweird.f32 %v765
      %vm825 = vweird.f32 %v818
      %vm826 = vmor %vm824, %vm825
      %v827 = vsel %vm826, %v818, %v823
      %v828 = vrsqrt.pop %v766
      %v829 = vmul.f32 %v828, %v766
      %v830 = vmul.f32 %v829, %v828
      %v831 = vmul.f32 0.5, %v830
      %v832 = vsub.f32 1.5, %v831
      %v833 = vmul.f32 %v828, %v832
      %vm834 = vweird.f32 %v766
      %vm835 = vweird.f32 %v828
      %vm836 = vmor %vm834, %vm835
      %v837 = vsel %vm836, %v828, %v833
      %v838 = vrsqrt.pop %v767
      %v839 = vmul.f32 %v838, %v767
      %v840 = vmul.f32 %v839, %v838
      %v841 = vmul.f32 0.5, %v840
      %v842 = vsub.f32 1.5, %v841
      %v843 = vmul.f32 %v838, %v842
      %vm844 = vweird.f32 %v767
      %vm845 = vweird.f32 %v838
      %vm846 = vmor %vm844, %vm845
      %v847 = vsel %vm846, %v838, %v843
      %v848 = vmul.f32 %v712, %v777
      %v849 = vmul.f32 %v713, %v787
      %v850 = vmul.f32 %v714, %v797
      %v851 = vmul.f32 %v715, %v807
      %v852 = vmul.f32 %v716, %v817
      %v853 = vmul.f32 %v717, %v827
      %v854 = vmul.f32 %v718, %v837
      %v855 = vmul.f32 %v719, %v847
      %v856 = vperm.slane %v246, 0
      %v857 = vmul.f32 %v848, %v856
      %v858 = vmul.f32 %v849, %v856
      %v859 = vmul.f32 %v850, %v856
      %v860 = vmul.f32 %v851, %v856
      %v861 = vmul.f32 %v852, %v856
      %v862 = vmul.f32 %v853, %v856
      %v863 = vmul.f32 %v854, %v856
      %v864 = vmul.f32 %v855, %v856
      %v865 = vperm.slane %v247, 0
      %v866 = vadd.f32 %v857, %v865
      %v867 = vadd.f32 %v858, %v865
      %v868 = vadd.f32 %v859, %v865
      %v869 = vadd.f32 %v860, %v865
      %v870 = vadd.f32 %v861, %v865
      %v871 = vadd.f32 %v862, %v865
      %v872 = vadd.f32 %v863, %v865
      %v873 = vadd.f32 %v864, %v865
      %v874 = vperm.slane %v345, 0
      %v875 = vmul.f32 %v866, %v874
      %v876 = vmul.f32 %v867, %v874
      %v877 = vmul.f32 %v868, %v874
      %v878 = vmul.f32 %v869, %v874
      %v879 = vmul.f32 %v870, %v874
      %v880 = vmul.f32 %v871, %v874
      %v881 = vmul.f32 %v872, %v874
      %v882 = vmul.f32 %v873, %v874
      %v883 = vsel %vm679, %v875, 0.0
      %884 = vadd.xlane.f32.xlu0 %v883
      %v885 = vpop.xlane.xlu0 %884
      %v886 = vsel %vm679, %v876, 0.0
      %887 = vadd.xlane.f32.xlu0 %v886
      %v888 = vpop.xlane.xlu0 %887
      %v889 = vsel %vm679, %v877, 0.0
      %890 = vadd.xlane.f32.xlu0 %v889
      %v891 = vpop.xlane.xlu0 %890
      %v892 = vsel %vm679, %v878, 0.0
      %893 = vadd.xlane.f32.xlu0 %v892
      %v894 = vpop.xlane.xlu0 %893
      %v895 = vsel %vm679, %v879, 0.0
      %896 = vadd.xlane.f32.xlu0 %v895
      %v897 = vpop.xlane.xlu0 %896
      %v898 = vsel %vm679, %v880, 0.0
      %899 = vadd.xlane.f32.xlu0 %v898
      %v900 = vpop.xlane.xlu0 %899
      %v901 = vsel %vm679, %v881, 0.0
      %902 = vadd.xlane.f32.xlu0 %v901
      %v903 = vpop.xlane.xlu0 %902
      %v904 = vsel %vm679, %v882, 0.0
      %905 = vadd.xlane.f32.xlu0 %v904
      %v906 = vpop.xlane.xlu0 %905
      %v907 = vmul.f32 %v885, 0.17677669
      %v908 = vmul.f32 %v888, 0.17677669
      %v909 = vmul.f32 %v891, 0.17677669
      %v910 = vmul.f32 %v894, 0.17677669
      %v911 = vmul.f32 %v897, 0.17677669
      %v912 = vmul.f32 %v900, 0.17677669
      %v913 = vmul.f32 %v903, 0.17677669
      %v914 = vmul.f32 %v906, 0.17677669
      %923 = vst [vmem:[#allocation1] ss:$2 sm:$0xff] %v866
      %s924 = scalar_lea.vmem [#allocation1], 1
      %925 = vst [vmem:[%s924] ss:$2 sm:$0xff] %v867
      %s926 = scalar_lea.vmem [#allocation1], 16
      %927 = vst [vmem:[%s926] ss:$2 sm:$0xff] %v868
      %s928 = scalar_lea.vmem [#allocation1], 17
      %929 = vst [vmem:[%s928] ss:$2 sm:$0xff] %v869
      %s930 = scalar_lea.vmem [#allocation1], 32
      %931 = vst [vmem:[%s930] ss:$2 sm:$0xff] %v870
      %s932 = scalar_lea.vmem [#allocation1], 33
      %933 = vst [vmem:[%s932] ss:$2 sm:$0xff] %v871
      %s934 = scalar_lea.vmem [#allocation1], 48
      %935 = vst [vmem:[%s934] ss:$2 sm:$0xff] %v872
      %s936 = scalar_lea.vmem [#allocation1], 49
      %937 = vst [vmem:[%s936] ss:$2 sm:$0xff] %v873
      %v938 = vld.sshfl [vmem:[#allocation1] sm:$0xff pattern:$0x75316420]
      %v939 = vld.sshfl [vmem:[#allocation1 + $0x10] sm:$0xff pattern:$0x75316420]
      %v940 = vld.sshfl [vmem:[#allocation1 + $0x20] sm:$0xff pattern:$0x75316420]
      %v941 = vld.sshfl [vmem:[#allocation1 + $0x30] sm:$0xff pattern:$0x75316420]
      %v946 = vpack.c.bf16 %v939, %v938
      %v947 = vpack.c.bf16 %v941, %v940
      %v948 = vperm.slane %v360, 0
      %v953 = vunpack.c.l.b16 %v352
      %v954 = vunpack.c.l.b16 %v353
      %v955 = vunpack.c.l.b16 %v354
      %v956 = vunpack.c.l.b16 %v355
      %v957 = vpack.c.b16 %v954, %v953
      %v958 = vpack.c.b16 %v956, %v955
      %v962 = vsel %vm292, %v946, 0
      %v965 = vsel %vm292, %v947, 0
      %967 = vmatpush.bf16.msra.mxu0 0
      %968 = vmatpush.bf16.msra.mxu0 0
      %969 = vmatpush.bf16.msra.mxu0 0
      %970 = vmatpush.bf16.msra.mxu0 0
      %971 = vmatpush.bf16.msra.mxu0 0
      %972 = vmatpush.bf16.msra.mxu0 0
      %973 = vmatpush.bf16.msra.mxu0 %v958
      %974 = vmatpush.bf16.msra.mxu0 %v957
      %975 = vmatmul.bf16.gmra.mxu0 %v962
      %v976 = vpop.f32.mrf.mxu0
      %v977 = vadd.f32 %v948, %v976
      %v978 = vpop.f32.mrf.mxu0
      %v979 = vadd.f32 %v948, %v978
      %980 = vmatmul.bf16.gmra.mxu0 %v965
      %v981 = vpop.f32.mrf.mxu0
      %v982 = vadd.f32 %v948, %v981
      %v983 = vpop.f32.mrf.mxu0
      %v984 = vadd.f32 %v948, %v983
      %985 = vdwg.mxu0
      %v994 = vlaneseq
      %v995 = vand.u32 %v994, 127
      %v996 = vperm.slane %v907, %v995
      %v997 = vperm.slane %v908, %v995
      %v998 = vperm.slane %v909, %v995
      %v999 = vperm.slane %v910, %v995
      %v1000 = vperm.slane %v911, %v995
      %v1001 = vperm.slane %v912, %v995
      %v1002 = vperm.slane %v913, %v995
      %v1003 = vperm.slane %v914, %v995
      %vm1004 = vcmask 1041409
      %v1005 = vsel %vm1004, %v997, %v996
      %vm1006 = vcmask 1042434
      %v1007 = vsel %vm1006, %v998, %v1005
      %vm1008 = vcmask 1043459
      %v1009 = vsel %vm1008, %v999, %v1007
      %vm1010 = vcmask 1044484
      %v1011 = vsel %vm1010, %v1000, %v1009
      %vm1012 = vcmask 1045509
      %v1013 = vsel %vm1012, %v1001, %v1011
      %vm1014 = vcmask 1046534
      %v1015 = vsel %vm1014, %v1002, %v1013
      %vm1016 = vcmask 1047559
      %v1017 = vsel %vm1016, %v1003, %v1015
      %vm1019 = vcmask 31744
      %v1020 = vsel %vm1019, %v1017, -inf
      %1021 = vmax.xlane.f32.xlu0 %v1020
      %v1022 = vpop.xlane.xlu0 %1021
      %v1023 = vperm.slane %v351, 0
      %v1024 = vmax.f32 %v1022, %v1023
      %v1026 = vperm.slane %v1024, 0
      %v1027 = vperm.slane %v1024, 1
      %v1028 = vperm.slane %v1024, 2
      %v1029 = vperm.slane %v1024, 3
      %v1030 = vperm.slane %v1024, 4
      %v1031 = vperm.slane %v1024, 5
      %v1032 = vperm.slane %v1024, 6
      %v1033 = vperm.slane %v1024, 7
      %v1042 = vsub.f32 %v907, %v1026
      %v1043 = vsub.f32 %v908, %v1027
      %v1044 = vsub.f32 %v909, %v1028
      %v1045 = vsub.f32 %v910, %v1029
      %v1046 = vsub.f32 %v911, %v1030
      %v1047 = vsub.f32 %v912, %v1031
      %v1048 = vsub.f32 %v913, %v1032
      %v1049 = vsub.f32 %v914, %v1033
      %v1050 = vmul.f32 %v1042, 1.442695
      %v1051 = vpow.pop %v1050
      %v1052 = vmul.f32 %v1043, 1.442695
      %v1053 = vpow.pop %v1052
      %v1054 = vmul.f32 %v1044, 1.442695
      %v1055 = vpow.pop %v1054
      %v1056 = vmul.f32 %v1045, 1.442695
      %v1057 = vpow.pop %v1056
      %v1058 = vmul.f32 %v1046, 1.442695
      %v1059 = vpow.pop %v1058
      %v1060 = vmul.f32 %v1047, 1.442695
      %v1061 = vpow.pop %v1060
      %v1062 = vmul.f32 %v1048, 1.442695
      %v1063 = vpow.pop %v1062
      %v1064 = vmul.f32 %v1049, 1.442695
      %v1065 = vpow.pop %v1064
      %v1066 = vsub.f32 %v1023, %v1024
      %v1067 = vmul.f32 %v1066, 1.442695
      %v1068 = vpow.pop %v1067
      %1077 = vset.pattern.permute.xlu0 0
      %1078 = vperm.xlu0 %1077, %v1051
      %v1079 = vpop.permute.xlu0 %1078
      %1080 = vset.pattern.permute.xlu0 0
      %1081 = vperm.xlu0 %1080, %v1053
      %v1082 = vpop.permute.xlu0 %1081
      %1083 = vset.pattern.permute.xlu0 0
      %1084 = vperm.xlu0 %1083, %v1055
      %v1085 = vpop.permute.xlu0 %1084
      %1086 = vset.pattern.permute.xlu0 0
      %1087 = vperm.xlu0 %1086, %v1057
      %v1088 = vpop.permute.xlu0 %1087
      %1089 = vset.pattern.permute.xlu0 0
      %1090 = vperm.xlu0 %1089, %v1059
      %v1091 = vpop.permute.xlu0 %1090
      %1092 = vset.pattern.permute.xlu0 0
      %1093 = vperm.xlu0 %1092, %v1061
      %v1094 = vpop.permute.xlu0 %1093
      %1095 = vset.pattern.permute.xlu0 0
      %1096 = vperm.xlu0 %1095, %v1063
      %v1097 = vpop.permute.xlu0 %1096
      %1098 = vset.pattern.permute.xlu0 0
      %1099 = vperm.xlu0 %1098, %v1065
      %v1100 = vpop.permute.xlu0 %1099
      %v1101 = vperm.slane %v1079, %v995
      %v1102 = vperm.slane %v1082, %v995
      %v1103 = vperm.slane %v1085, %v995
      %v1104 = vperm.slane %v1088, %v995
      %v1105 = vperm.slane %v1091, %v995
      %v1106 = vperm.slane %v1094, %v995
      %v1107 = vperm.slane %v1097, %v995
      %v1108 = vperm.slane %v1100, %v995
      %v1109 = vsel %vm1004, %v1102, %v1101
      %v1110 = vsel %vm1006, %v1103, %v1109
      %v1111 = vsel %vm1008, %v1104, %v1110
      %v1112 = vsel %vm1010, %v1105, %v1111
      %v1113 = vsel %vm1012, %v1106, %v1112
      %v1114 = vsel %vm1014, %v1107, %v1113
      %v1115 = vsel %vm1016, %v1108, %v1114
      %v1117 = vsel %vm1019, %v1115, 0.0
      %1118 = vadd.xlane.f32.xlu0 %v1117
      %v1119 = vpop.xlane.xlu0 %1118
      %v1120 = vadd.f32 %v1068, %v1119
      %v1121 = vrcp.pop %v1120
      %v1126 = vrot.slane %v977, 4
      %v1127 = vrot.slane %v979, 4
      %v1128 = vrot.slane %v982, 4
      %v1129 = vrot.slane %v984, 4
      %v1142 = vmul.f32 %v1079, %v977
      %v1143 = vmul.f32 %v1082, %v1126
      %v1144 = vmul.f32 %v1085, %v979
      %v1145 = vmul.f32 %v1088, %v1127
      %v1146 = vmul.f32 %v1091, %v982
      %v1147 = vmul.f32 %v1094, %v1128
      %v1148 = vmul.f32 %v1097, %v984
      %v1149 = vmul.f32 %v1100, %v1129
      %v1150 = vsel %vm679, %v1142, 0.0
      %v1151 = vrot.slane %v1150, 4
      %v1152 = vadd.f32 %v1150, %v1151
      %v1153 = vrot.slane %v1152, 2
      %v1154 = vadd.f32 %v1152, %v1153
      %v1155 = vrot.slane %v1154, 1
      %v1156 = vadd.f32 %v1154, %v1155
      %v1157 = vsel %vm679, %v1143, 0.0
      %v1158 = vrot.slane %v1157, 4
      %v1159 = vadd.f32 %v1157, %v1158
      %v1160 = vrot.slane %v1159, 2
      %v1161 = vadd.f32 %v1159, %v1160
      %v1162 = vrot.slane %v1161, 1
      %v1163 = vadd.f32 %v1161, %v1162
      %v1164 = vsel %vm679, %v1144, 0.0
      %v1165 = vrot.slane %v1164, 4
      %v1166 = vadd.f32 %v1164, %v1165
      %v1167 = vrot.slane %v1166, 2
      %v1168 = vadd.f32 %v1166, %v1167
      %v1169 = vrot.slane %v1168, 1
      %v1170 = vadd.f32 %v1168, %v1169
      %v1171 = vsel %vm679, %v1145, 0.0
      %v1172 = vrot.slane %v1171, 4
      %v1173 = vadd.f32 %v1171, %v1172
      %v1174 = vrot.slane %v1173, 2
      %v1175 = vadd.f32 %v1173, %v1174
      %v1176 = vrot.slane %v1175, 1
      %v1177 = vadd.f32 %v1175, %v1176
      %v1178 = vsel %vm679, %v1146, 0.0
      %v1179 = vrot.slane %v1178, 4
      %v1180 = vadd.f32 %v1178, %v1179
      %v1181 = vrot.slane %v1180, 2
      %v1182 = vadd.f32 %v1180, %v1181
      %v1183 = vrot.slane %v1182, 1
      %v1184 = vadd.f32 %v1182, %v1183
      %v1185 = vsel %vm679, %v1147, 0.0
      %v1186 = vrot.slane %v1185, 4
      %v1187 = vadd.f32 %v1185, %v1186
      %v1188 = vrot.slane %v1187, 2
      %v1189 = vadd.f32 %v1187, %v1188
      %v1190 = vrot.slane %v1189, 1
      %v1191 = vadd.f32 %v1189, %v1190
      %v1192 = vsel %vm679, %v1148, 0.0
      %v1193 = vrot.slane %v1192, 4
      %v1194 = vadd.f32 %v1192, %v1193
      %v1195 = vrot.slane %v1194, 2
      %v1196 = vadd.f32 %v1194, %v1195
      %v1197 = vrot.slane %v1196, 1
      %v1198 = vadd.f32 %v1196, %v1197
      %v1199 = vsel %vm679, %v1149, 0.0
      %v1200 = vrot.slane %v1199, 4
      %v1201 = vadd.f32 %v1199, %v1200
      %v1202 = vrot.slane %v1201, 2
      %v1203 = vadd.f32 %v1201, %v1202
      %v1204 = vrot.slane %v1203, 1
      %v1205 = vadd.f32 %v1203, %v1204
      %v1206 = vperm.slane %v379, 0
      %v1207 = vmul.f32 %v1068, %v1206
      %v1209 = vrot.slane %v1207, 1
      %v1210 = vrot.slane %v1207, 2
      %v1211 = vrot.slane %v1207, 3
      %v1212 = vrot.slane %v1207, 4
      %v1213 = vrot.slane %v1207, 5
      %v1214 = vrot.slane %v1207, 6
      %v1215 = vrot.slane %v1207, 7
      %v1224 = vadd.f32 %v1156, %v1207
      %v1225 = vadd.f32 %v1163, %v1209
      %v1226 = vadd.f32 %v1170, %v1210
      %v1227 = vadd.f32 %v1177, %v1211
      %v1228 = vadd.f32 %v1184, %v1212
      %v1229 = vadd.f32 %v1191, %v1213
      %v1230 = vadd.f32 %v1198, %v1214
      %v1231 = vadd.f32 %v1205, %v1215
      %v1233 = vrot.slane %v1121, 1
      %v1234 = vrot.slane %v1121, 2
      %v1235 = vrot.slane %v1121, 3
      %v1236 = vrot.slane %v1121, 4
      %v1237 = vrot.slane %v1121, 5
      %v1238 = vrot.slane %v1121, 6
      %v1239 = vrot.slane %v1121, 7
      %v1248 = vmul.f32 %v1224, %v1121
      %v1249 = vmul.f32 %v1225, %v1233
      %v1250 = vmul.f32 %v1226, %v1234
      %v1251 = vmul.f32 %v1227, %v1235
      %v1252 = vmul.f32 %v1228, %v1236
      %v1253 = vmul.f32 %v1229, %v1237
      %v1254 = vmul.f32 %v1230, %v1238
      %v1255 = vmul.f32 %v1231, %v1239
      %v1256 = vpack.c.bf16 %v1248, %v1248
      %v1257 = vpack.c.bf16 %v1249, %v1249
      %v1258 = vpack.c.bf16 %v1250, %v1250
      %v1259 = vpack.c.bf16 %v1251, %v1251
      %v1260 = vpack.c.bf16 %v1252, %v1252
      %v1261 = vpack.c.bf16 %v1253, %v1253
      %v1262 = vpack.c.bf16 %v1254, %v1254
      %v1263 = vpack.c.bf16 %v1255, %v1255
      %v1264 = vld [vmem:[%s232 + $0x50] sm:$0xf]
      %v1265 = vld [vmem:[%s232 + $0x54] sm:$0xf]
      %v1266 = vld [vmem:[%s232 + $0x58] sm:$0xf]
      %v1267 = vld [vmem:[%s232 + $0x5c] sm:$0xf]
      %v1268 = vld [vmem:[%s237 + $0x60] sm:$0x1]
      %v1269 = vperm.slane %v1268, 0
      %v1278 = vunpack.c.l.b16 %v1256
      %v1279 = vunpack.c.l.b16 %v1257
      %v1280 = vunpack.c.l.b16 %v1258
      %v1281 = vunpack.c.l.b16 %v1259
      %v1282 = vunpack.c.l.b16 %v1260
      %v1283 = vunpack.c.l.b16 %v1261
      %v1284 = vunpack.c.l.b16 %v1262
      %v1285 = vunpack.c.l.b16 %v1263
      %v1286 = vrot.slane %v1279, 7
      %v1287 = vsel %vm1004, %v1286, %v1278
      %v1288 = vrot.slane %v1280, 6
      %v1289 = vsel %vm1006, %v1288, %v1287
      %v1290 = vrot.slane %v1281, 5
      %v1291 = vsel %vm1008, %v1290, %v1289
      %v1292 = vrot.slane %v1282, 4
      %v1293 = vsel %vm1010, %v1292, %v1291
      %v1294 = vrot.slane %v1283, 3
      %v1295 = vsel %vm1012, %v1294, %v1293
      %v1296 = vrot.slane %v1284, 2
      %v1297 = vsel %vm1014, %v1296, %v1295
      %v1298 = vrot.slane %v1285, 1
      %v1299 = vsel %vm1016, %v1298, %v1297
      %v1300 = vpack.c.b16 %v1299, %v1299
      %v1305 = vunpack.c.l.b16 %v1264
      %v1306 = vunpack.c.l.b16 %v1265
      %v1307 = vunpack.c.l.b16 %v1266
      %v1308 = vunpack.c.l.b16 %v1267
      %v1309 = vpack.c.b16 %v1306, %v1305
      %v1310 = vpack.c.b16 %v1308, %v1307
      %v1314 = vsel %vm292, %v1300, 0
      %1316 = vmatpush.bf16.msra.mxu0 0
      %1317 = vmatpush.bf16.msra.mxu0 0
      %1318 = vmatpush.bf16.msra.mxu0 0
      %1319 = vmatpush.bf16.msra.mxu0 0
      %1320 = vmatpush.bf16.msra.mxu0 0
      %1321 = vmatpush.bf16.msra.mxu0 0
      %1322 = vmatpush.bf16.msra.mxu0 %v1310
      %1323 = vmatpush.bf16.msra.mxu0 %v1309
      %1324 = vmatmul.bf16.gmra.mxu0 %v1314
      %v1325 = vpop.f32.mrf.mxu0
      %v1326 = vadd.f32 %v1269, %v1325
      %v1327 = vpop.f32.mrf.mxu0
      %1328 = vdwg.mxu0
      %v1329 = vperm.slane %v250, 0
      %v1330 = vadd.f32 %v1329, %v1326
      %v1331 = vld [vmem:[%s237 + $0x68] sm:$0x1]
      %v1332 = vld [vmem:[%s237 + $0x70] sm:$0x1]
      %v1333 = vsel %vm292, %v1330, 0.0
      %1334 = vadd.xlane.f32.xlu0 %v1333
      %v1335 = vpop.xlane.xlu0 %1334
      %v1336 = vmul.f32 %v1335, %v261
      %v1337 = vsub.f32 %v1330, %v1336
      %v1338 = vmul.f32 %v1337, %v1337
      %v1339 = vsel %vm292, %v1338, 0.0
      %1340 = vadd.xlane.f32.xlu0 %v1339
      %v1341 = vpop.xlane.xlu0 %1340
      %v1342 = vmul.f32 %v1341, %v261
      %v1343 = vadd.f32 %v1342, 1e-05
      %v1344 = vrsqrt.pop %v1343
      %v1345 = vmul.f32 %v1344, %v1343
      %v1346 = vmul.f32 %v1345, %v1344
      %v1347 = vmul.f32 0.5, %v1346
      %v1348 = vsub.f32 1.5, %v1347
      %v1349 = vmul.f32 %v1344, %v1348
      %vm1350 = vweird.f32 %v1343
      %vm1351 = vweird.f32 %v1344
      %vm1352 = vmor %vm1350, %vm1351
      %v1353 = vsel %vm1352, %v1344, %v1349
      %v1354 = vmul.f32 %v1337, %v1353
      %v1355 = vperm.slane %v1331, 0
      %v1356 = vmul.f32 %v1354, %v1355
      %v1357 = vperm.slane %v1332, 0
      %v1358 = vadd.f32 %v1356, %v1357
      %v1359 = vpack.c.bf16 %v1358, %v1358
      %v1360 = vld [vmem:[%s232 + $0x60] sm:$0xf]
      %v1361 = vld [vmem:[%s232 + $0x64] sm:$0xf]
      %v1362 = vld [vmem:[%s232 + $0x68] sm:$0xf]
      %v1363 = vld [vmem:[%s232 + $0x6c] sm:$0xf]
      %v1364 = vld [vmem:[%s237 + $0x78] sm:$0x1]
      %v1365 = vperm.slane %v1364, 0
      %v1370 = vunpack.c.l.b16 %v1360
      %v1371 = vunpack.c.l.b16 %v1361
      %v1372 = vunpack.c.l.b16 %v1362
      %v1373 = vunpack.c.l.b16 %v1363
      %v1374 = vpack.c.b16 %v1371, %v1370
      %v1375 = vpack.c.b16 %v1373, %v1372
      %v1379 = vsel %vm292, %v1359, 0
      %1381 = vmatpush.bf16.msra.mxu0 0
      %1382 = vmatpush.bf16.msra.mxu0 0
      %1383 = vmatpush.bf16.msra.mxu0 0
      %1384 = vmatpush.bf16.msra.mxu0 0
      %1385 = vmatpush.bf16.msra.mxu0 0
      %1386 = vmatpush.bf16.msra.mxu0 0
      %1387 = vmatpush.bf16.msra.mxu0 %v1375
      %1388 = vmatpush.bf16.msra.mxu0 %v1374
      %1389 = vmatmul.bf16.gmra.mxu0 %v1379
      %v1390 = vpop.f32.mrf.mxu0
      %v1391 = vadd.f32 %v1365, %v1390
      %v1392 = vpop.f32.mrf.mxu0
      %1393 = vdwg.mxu0
      %v1394 = vmul.f32 %v1391, %v1391
      %v1395 = vmul.f32 %v1391, %v1394
      %v1396 = vmul.f32 %v1395, 0.044715
      %v1397 = vadd.f32 %v1391, %v1396
      %v1398 = vmul.f32 %v1397, 0.7978846
      %v1399 = vtanh.pop %v1398
      %v1400 = vadd.f32 %v1399, 1.0
      %v1401 = vmul.f32 %v1400, 0.5
      %v1402 = vmul.f32 %v1391, %v1401
      %v1403 = vpack.c.bf16 %v1402, %v1402
      %v1404 = vld [vmem:[%s232 + $0x70] sm:$0xf]
      %v1405 = vld [vmem:[%s232 + $0x74] sm:$0xf]
      %v1406 = vld [vmem:[%s232 + $0x78] sm:$0xf]
      %v1407 = vld [vmem:[%s232 + $0x7c] sm:$0xf]
      %v1408 = vld [vmem:[%s232 + $0x80] sm:$0xf]
      %v1409 = vld [vmem:[%s232 + $0x84] sm:$0xf]
      %v1410 = vld [vmem:[%s232 + $0x88] sm:$0xf]
      %v1411 = vld [vmem:[%s232 + $0x8c] sm:$0xf]
      %v1412 = vld [vmem:[%s237 + $0x80] sm:$0x1]
      %v1413 = vperm.slane %v1412, 0
      %v1422 = vunpack.c.l.b16 %v1404
      %v1423 = vunpack.c.l.b16 %v1405
      %v1424 = vunpack.c.l.b16 %v1406
      %v1425 = vunpack.c.l.b16 %v1407
      %v1426 = vunpack.c.l.b16 %v1408
      %v1427 = vunpack.c.l.b16 %v1409
      %v1428 = vunpack.c.l.b16 %v1410
      %v1429 = vunpack.c.l.b16 %v1411
      %v1430 = vpack.c.b16 %v1423, %v1422
      %v1431 = vpack.c.b16 %v1425, %v1424
      %v1432 = vpack.c.b16 %v1427, %v1426
      %v1433 = vpack.c.b16 %v1429, %v1428
      %v1439 = vsel %vm391, %v1403, 0
      %1441 = vmatpush.bf16.msra.mxu0 0
      %1442 = vmatpush.bf16.msra.mxu0 0
      %1443 = vmatpush.bf16.msra.mxu0 0
      %1444 = vmatpush.bf16.msra.mxu0 0
      %1445 = vmatpush.bf16.msra.mxu0 %v1433
      %1446 = vmatpush.bf16.msra.mxu0 %v1432
      %1447 = vmatpush.bf16.msra.mxu0 %v1431
      %1448 = vmatpush.bf16.msra.mxu0 %v1430
      %1449 = vmatmul.bf16.gmra.mxu0 %v1439
      %v1450 = vpop.f32.mrf.mxu0
      %v1451 = vadd.f32 %v1413, %v1450
      %v1452 = vpop.f32.mrf.mxu0
      %1453 = vdwg.mxu0
      %v1454 = vadd.f32 %v1330, %v1451
      %v1455 = vld [vmem:[%s237 + $0x88] sm:$0x1]
      %v1456 = vld [vmem:[%s237 + $0x90] sm:$0x1]
      %v1457 = vsel %vm292, %v1454, 0.0
      %1458 = vadd.xlane.f32.xlu0 %v1457
      %v1459 = vpop.xlane.xlu0 %1458
      %v1460 = vmul.f32 %v1459, %v261
      %v1461 = vsub.f32 %v1454, %v1460
      %v1462 = vmul.f32 %v1461, %v1461
      %v1463 = vsel %vm292, %v1462, 0.0
      %1464 = vadd.xlane.f32.xlu0 %v1463
      %v1465 = vpop.xlane.xlu0 %1464
      %v1466 = vmul.f32 %v1465, %v261
      %v1467 = vadd.f32 %v1466, 1e-05
      %v1468 = vrsqrt.pop %v1467
      %v1469 = vmul.f32 %v1468, %v1467
      %v1470 = vmul.f32 %v1469, %v1468
      %v1471 = vmul.f32 0.5, %v1470
      %v1472 = vsub.f32 1.5, %v1471
      %v1473 = vmul.f32 %v1468, %v1472
      %vm1474 = vweird.f32 %v1467
      %vm1475 = vweird.f32 %v1468
      %vm1476 = vmor %vm1474, %vm1475
      %v1477 = vsel %vm1476, %v1468, %v1473
      %v1478 = vmul.f32 %v1461, %v1477
      %v1479 = vperm.slane %v1455, 0
      %v1480 = vmul.f32 %v1478, %v1479
      %v1481 = vperm.slane %v1456, 0
      %v1482 = vadd.f32 %v1480, %v1481
      %1483 = vst.msk [vmem:[%s244] sm:$0xff] %vm292, %v1482
      %p1484 = scmp.lt.s32.totalorder %s18, 1
      %s1485 = scalar_select %p1484, %s18, 1
      %p1486 = scmp.lt.s32.totalorder %s19, 0
      %s1487 = scalar_select %p1486, %s19, 0
      %s1488 = sadd.s32 %s1487, %s1485
      %s1489 = smul.addr %s1488, 8
      %s1490 = scalar_lea.vmem %s3, %s1489
      // Predicated region
      $region33: #{encoder_vit_forward.1} parent=31 // pred_check
        %p1491 = pneg %p126
      $region34: #{encoder_vit_forward.1} parent=31 // pred_check_branch
        %1493 = sbr.rel (%p1491) target = $region36
      $region35: #{encoder_vit_forward.1} parent=31 // pred_region
        _
      $region36: #{encoder_vit_forward.1} parent=31 // pred_fallthru
        _
    $region32: #{encoder_vit_forward.1} parent=5 // pred_fallthru
      _
    %p1494 = scmp.le.s32.totalorder 2, %s9
    // Predicated region
    $region37: #{encoder_vit_forward.1} parent=5 // pred_check
      %p1495 = pneg %p1494
    $region38: #{encoder_vit_forward.1} parent=5 // pred_check_branch
      %1497 = sbr.rel (%p1495) target = $region40
    $region39: #{encoder_vit_forward.1} parent=5 // pred_region
      %s1498 = ssub.s32 %s9, 2
      // Predicated region
      $region41: #{encoder_vit_forward.1} parent=39 // pred_check
        %p1499 = pneg %p132
      $region42: #{encoder_vit_forward.1} parent=39 // pred_check_branch
        %1501 = sbr.rel (%p1499) target = $region44
      $region43: #{encoder_vit_forward.1} parent=39 // pred_region
        %p1502 = scmp.lt.s32.totalorder %s20, 1
        %s1503 = scalar_select %p1502, %s20, 1
        %p1504 = scmp.lt.s32.totalorder %s21, 0
        %s1505 = scalar_select %p1504, %s21, 0
        %s1506 = sadd.s32 %s1505, %s1503
        %s1507 = smul.addr %s1506, 8
        %s1508 = scalar_lea.vmem %s3, %s1507
      $region44: #{encoder_vit_forward.1} parent=39 // pred_fallthru
        _
    $region40: #{encoder_vit_forward.1} parent=5 // pred_fallthru
      _
  $region6: #{encoder_vit_forward.1} parent=0 // loop_footer
    %s13 = sadd.s32 1, %s9
  $region7: #{encoder_vit_forward.1} parent=0 // loop_footer_branch
    %8 = sbr.rel target = $region3
  $region8: #{encoder_vit_forward.1} parent=0 // loop_exit
    _

</llo_original>
